<compile_context>
chip_gen: v6e
topology: v6e:2x2x1
jax: 0.10.0
libtpu: 0.0.40
codegen_flags: <defaults>
</compile_context>

<pallas_src>
import functools

import jax
import jax.numpy as jnp
import numpy as np
from jax.experimental import pallas as pl
from jax.experimental.pallas import tpu as pltpu


# ----------------------------------------------------------------------------
# Helpers
# ----------------------------------------------------------------------------
def _round_up(n, m):
    return ((n + m - 1) // m) * m


def _act(name, v):
    if name == "relu":
        return jnp.maximum(v, 0.0)
    return jnp.tanh(v)


# ----------------------------------------------------------------------------
# Static parameter-slab layout (derived from cfg only)
# ----------------------------------------------------------------------------
def build_layout(cfg):
    H = cfg["lstm_hidden_size"]
    n_layers = cfg["lstm_num_layers"]
    n_dirs = 2 if cfg["lstm_bidirectional"] else 1
    wcol = _round_up(max(4 * H, cfg["lstm_output_size"], cfg["fc_hidden_size"],
                         cfg["fc_output_size"]), 128)

    w_entries = []
    for l in range(n_layers):
        din = cfg["lstm_input_size"] if l == 0 else H * n_dirs
        for d in range(n_dirs):
            w_entries.append((f"wih_{l}_{d}", din, 4 * H))
            w_entries.append((f"whh_{l}_{d}", H, 4 * H))
    w_entries += [
        ("lstm_fc_w", H * n_dirs, cfg["lstm_output_size"]),
        ("fc1_w", cfg["fc_input_size"], cfg["fc_hidden_size"]),
        ("fcm_w", cfg["fc_hidden_size"], cfg["fc_hidden_size"]),
        ("fc2_w", cfg["fc_hidden_size"], cfg["fc_output_size"]),
    ]
    wmap, off = {}, 0
    for name, r, c in w_entries:
        wmap[name] = (off, r, c)
        off += _round_up(r, 8)          # 8-sublane aligned blocks
    wrows = _round_up(off, 8)

    b_entries = []
    for l in range(n_layers):
        for d in range(n_dirs):
            b_entries.append((f"b_{l}_{d}", 4 * H))
    b_entries += [("lstm_fc_b", cfg["lstm_output_size"]),
                  ("fc1_b", cfg["fc_hidden_size"]),
                  ("fcm_b", cfg["fc_hidden_size"]),
                  ("fc2_b", cfg["fc_output_size"])]
    bmap, off = {}, 0
    for name, c in b_entries:
        bmap[name] = (off, c)
        off += 8                        # one 8-row block per bias
    brows = off

    return dict(wmap=wmap, wrows=wrows, wcol=wcol, bmap=bmap, brows=brows, bcol=wcol)


def pack_params(P, cfg, layout):
    """One-time host-side packing: bf16 weight slab + f32 bias slab."""
    wslab = np.zeros((layout["wrows"], layout["wcol"]), np.float32)
    bslab = np.zeros((layout["brows"], layout["bcol"]), np.float32)
    n_layers = cfg["lstm_num_layers"]
    n_dirs = 2 if cfg["lstm_bidirectional"] else 1
    dnames = ["fw", "bw"][:n_dirs]

    def put_w(name, arr):
        off, r, c = layout["wmap"][name]
        wslab[off:off + r, :c] = np.asarray(arr, np.float32)

    def put_b(name, arr):
        off, c = layout["bmap"][name]
        bslab[off, :c] = np.asarray(arr, np.float32).reshape(-1)

    for l in range(n_layers):
        for d, dn in enumerate(dnames):
            wih, whh, b = P["lstm"][l][dn]
            put_w(f"wih_{l}_{d}", wih)
            put_w(f"whh_{l}_{d}", whh)
            put_b(f"b_{l}_{d}", b)
    put_w("lstm_fc_w", P["lstm_fc_w"]); put_b("lstm_fc_b", P["lstm_fc_b"])
    put_w("fc1_w", P["fc1_w"]);         put_b("fc1_b", P["fc1_b"])
    put_w("fcm_w", P["fcm_w"]);         put_b("fcm_b", P["fcm_b"])
    put_w("fc2_w", P["fc2_w"]);         put_b("fc2_b", P["fc2_b"])
    return jnp.asarray(wslab, jnp.bfloat16), jnp.asarray(bslab, jnp.float32)


# ----------------------------------------------------------------------------
# Fused kernel
# ----------------------------------------------------------------------------
def _fused_forward_kernel(x_ref, w_ref, b_ref, out_ref, *, T, B, H,
                          n_layers, n_dirs, n_mid, lstm_act, fc_act,
                          wmap, bmap):
    B2 = 2 * B            # both siamese branches batched together
    f32, bf16 = jnp.float32, jnp.bfloat16

    def W(name):
        off, r, c = wmap[name]
        return w_ref[off:off + r, 0:c]          # bf16 weight tile

    def Bv(name):
        off, c = bmap[name]
        return b_ref[off:off + 1, 0:c]          # f32 (1, c) bias

    cur = x_ref[...]                            # (T*2B, Din) f32, t-major rows
    last = None
    for l in range(n_layers):
        is_last = (l == n_layers - 1)
        cur_bf = cur.astype(bf16)

        # Hoisted input projection: one MXU call per direction, off the serial
        # h-chain. (T*2B, Din) @ (Din, 4H) + b
        projs = [jnp.dot(cur_bf, W(f"wih_{l}_{d}"), preferred_element_type=f32)
                 + Bv(f"b_{l}_{d}") for d in range(n_dirs)]

        # Recurrent weights; for bidirectional, fw|bw fused along N (4H -> 8H)
        # so the per-step serial chain has a single 256-wide MXU issue.
        if n_dirs == 1:
            whh = W(f"whh_{l}_0")
        else:
            whh = jnp.concatenate([W(f"whh_{l}_{d}") for d in range(n_dirs)], axis=1)

        c = jnp.zeros((n_dirs * B2, H), f32)
        h = None
        outs_fw = [None] * T
        outs_bw = [None] * T
        for s in range(T):                       # fw walks t=s, bw walks t=T-1-s
            if n_dirs == 1:
                g = projs[0][s * B2:(s + 1) * B2, :]
            else:
                tb = T - 1 - s
                g = jnp.concatenate(
                    [projs[0][s * B2:(s + 1) * B2, :],
                     projs[1][tb * B2:(tb + 1) * B2, :]], axis=0)
            if s > 0:
                rec = jnp.dot(h.astype(bf16), whh, preferred_element_type=f32)
                if n_dirs == 1:
                    g = g + rec
                else:
                    g = g + jnp.concatenate(
                        [rec[0:B2, 0:4 * H], rec[B2:2 * B2, 4 * H:8 * H]], axis=0)

            # Gate math (f32): sigmoid via tanh = 1 EUP push; tanh only on the
            # g-gate lanes; PyTorch gate order (i, f, g, o).
            sig = 0.5 * jnp.tanh(0.5 * g) + 0.5
            gg = jnp.tanh(g[:, 2 * H:3 * H])
            c = sig[:, H:2 * H] * c + sig[:, 0:H] * gg
            h = sig[:, 3 * H:4 * H] * jnp.tanh(c)

            if n_dirs == 1:
                outs_fw[s] = h
            else:
                outs_fw[s] = h[0:B2, :]
                outs_bw[T - 1 - s] = h[B2:2 * B2, :]

        # PyTorch out[:, -1, :]: fw at its last step, bw at t=T-1 (its 1st step).
        if n_dirs == 1:
            step_out = outs_fw
        else:
            step_out = [jnp.concatenate([outs_fw[t], outs_bw[t]], axis=1)
                        for t in range(T)]
        if is_last:
            last = step_out[T - 1]               # (2B, H*n_dirs)
        else:
            # Inter-layer sequence stays in registers — no VMEM round-trip.
            cur = jnp.concatenate(step_out, axis=0)   # (T*2B, H*n_dirs)

    # LSTM head: fc(out[:, -1, :]) -> activation (both branches at once)
    y = _act(lstm_act,
             jnp.dot(last.astype(bf16), W("lstm_fc_w"),
                     preferred_element_type=f32) + Bv("lstm_fc_b"))

    # Siamese combine: cat(|y1 - y2|, y1 * y2)
    y1 = y[0:B, :]
    y2 = y[B:2 * B, :]
    feat = jnp.concatenate([jnp.abs(y1 - y2), y1 * y2], axis=1)

    # FCNN head (faithful to the PyTorch module: all middle layers share the
    # single self.fc weights — the __init__ loop overwrites it).
    hh = _act(fc_act, jnp.dot(feat.astype(bf16), W("fc1_w"),
                              preferred_element_type=f32) + Bv("fc1_b"))
    for _ in range(n_mid):
        hh = _act(fc_act, jnp.dot(hh.astype(bf16), W("fcm_w"),
                                  preferred_element_type=f32) + Bv("fcm_b"))
    out_ref[...] = (jnp.dot(hh.astype(bf16), W("fc2_w"),
                            preferred_element_type=f32) + Bv("fc2_b"))


# ----------------------------------------------------------------------------
# Wrapper
# ----------------------------------------------------------------------------
def model_forward(x1, x2, w_slab, b_slab, cfg, layout):
    B, T, Din = x1.shape
    H = cfg["lstm_hidden_size"]
    n_layers = cfg["lstm_num_layers"]
    n_dirs = 2 if cfg["lstm_bidirectional"] else 1
    n_mid = cfg["fc_num_layers"] - 1

    # Batch the two shared-weight siamese branches (B -> 2B) and present the
    # sequence as a t-major 2-D slab (row = t*2B + b) so the in-kernel input
    # projection is a single matmul.
    xs = jnp.concatenate([x1, x2], axis=0)                        # (2B, T, Din)
    x_tm = jnp.transpose(xs, (1, 0, 2)).reshape(T * 2 * B, Din)

    kernel = functools.partial(
        _fused_forward_kernel, T=T, B=B, H=H, n_layers=n_layers,
        n_dirs=n_dirs, n_mid=n_mid, lstm_act=cfg["lstm_activation"],
        fc_act=cfg["fc_activation"], wmap=layout["wmap"], bmap=layout["bmap"])

    out = pl.pallas_call(
        kernel,
        out_shape=jax.ShapeDtypeStruct((B, cfg["fc_output_size"]), jnp.float32),
        compiler_params=pltpu.CompilerParams(vmem_limit_bytes=32 * 1024 * 1024),
    )(x_tm, w_slab, b_slab)
    # x.squeeze(1)
    return out[:, 0] if cfg["fc_output_size"] == 1 else out


# ----------------------------------------------------------------------------
# Pure-JAX reference (f32, for correctness check)
# ----------------------------------------------------------------------------
def _lstm_layer_ref(x, w_ih_t, w_hh_t, b):
    B, T, _ = x.shape
    H = w_hh_t.shape[0]
    h = jnp.zeros((B, H), jnp.float32)
    c = jnp.zeros((B, H), jnp.float32)
    outs = []
    for t in range(T):
        gates = x[:, t, :] @ w_ih_t + h @ w_hh_t + b
        i = jax.nn.sigmoid(gates[:, :H])
        f = jax.nn.sigmoid(gates[:, H:2 * H])
        g = jnp.tanh(gates[:, 2 * H:3 * H])
        o = jax.nn.sigmoid(gates[:, 3 * H:])
        c = f * c + i * g
        h = o * jnp.tanh(c)
        outs.append(h)
    return jnp.stack(outs, axis=1)


def ref_forward(x1, x2, P, cfg):
    def act(v, name):
        return jnp.maximum(v, 0.0) if name == "relu" else jnp.tanh(v)

    def branch(x):
        h = x
        for l in range(cfg["lstm_num_layers"]):
            lp = P["lstm"][l]
            fw = _lstm_layer_ref(h, *lp["fw"])
            if cfg["lstm_bidirectional"]:
                bw = _lstm_layer_ref(h[:, ::-1, :], *lp["bw"])[:, ::-1, :]
                h = jnp.concatenate([fw, bw], axis=-1)
            else:
                h = fw
        last = h[:, -1, :]
        return act(last @ P["lstm_fc_w"] + P["lstm_fc_b"], cfg["lstm_activation"])

    y1 = branch(x1)
    y2 = branch(x2)
    x = jnp.concatenate([jnp.abs(y1 - y2), y1 * y2], axis=1)
    h = act(x @ P["fc1_w"] + P["fc1_b"], cfg["fc_activation"])
    for _ in range(cfg["fc_num_layers"] - 1):
        h = act(h @ P["fcm_w"] + P["fcm_b"], cfg["fc_activation"])
    out = h @ P["fc2_w"] + P["fc2_b"]
    return out[:, 0] if cfg["fc_output_size"] == 1 else out


# ----------------------------------------------------------------------------
# Deterministic parameter init (PyTorch-style uniform bounds)
# ----------------------------------------------------------------------------
def init_params(key, cfg):
    def u(k, shape, bound):
        return jax.random.uniform(k, shape, jnp.float32, -bound, bound)

    keys = iter(jax.random.split(key, 64))
    H = cfg["lstm_hidden_size"]
    dirs = 2 if cfg["lstm_bidirectional"] else 1
    lstm_bound = 1.0 / np.sqrt(H)

    lstm_params = []
    for l in range(cfg["lstm_num_layers"]):
        din = cfg["lstm_input_size"] if l == 0 else H * dirs
        layer = {}
        for d in (["fw", "bw"] if cfg["lstm_bidirectional"] else ["fw"]):
            w_ih_t = u(next(keys), (din, 4 * H), lstm_bound)
            w_hh_t = u(next(keys), (H, 4 * H), lstm_bound)
            b_ih = u(next(keys), (4 * H,), lstm_bound)
            b_hh = u(next(keys), (4 * H,), lstm_bound)
            layer[d] = (w_ih_t, w_hh_t, (b_ih + b_hh).reshape(1, 4 * H))
        lstm_params.append(layer)

    def lin(k1, k2, din, dout):
        bound = 1.0 / np.sqrt(din)
        return u(k1, (din, dout), bound), u(k2, (1, dout), bound)

    lstm_fc_w, lstm_fc_b = lin(next(keys), next(keys), H * dirs, cfg["lstm_output_size"])
    fc1_w, fc1_b = lin(next(keys), next(keys), cfg["fc_input_size"], cfg["fc_hidden_size"])
    fcm_w, fcm_b = lin(next(keys), next(keys), cfg["fc_hidden_size"], cfg["fc_hidden_size"])
    fc2_w, fc2_b = lin(next(keys), next(keys), cfg["fc_hidden_size"], cfg["fc_output_size"])

    return {
        "lstm": lstm_params,
        "lstm_fc_w": lstm_fc_w, "lstm_fc_b": lstm_fc_b,
        "fc1_w": fc1_w, "fc1_b": fc1_b,
        "fcm_w": fcm_w, "fcm_b": fcm_b,
        "fc2_w": fc2_w, "fc2_b": fc2_b,
    }


# ----------------------------------------------------------------------------
if __name__ == "__main__":
    base_cfg = dict(
        lstm_input_size=8,
        lstm_hidden_size=32,
        lstm_num_layers=2,
        lstm_output_size=16,
        lstm_activation="tanh",
        lstm_bidirectional=False,
        fc_input_size=32,          # = 2 * lstm_output_size (cat of |diff| and prod)
        fc_hidden_size=32,
        fc_output_size=1,
        fc_activation="relu",
        fc_num_layers=2,
    )
    B, T = 2, 8

    for bidir in (False, True):
        cfg = dict(base_cfg, lstm_bidirectional=bidir)
        key = jax.random.PRNGKey(0)
        kx1, kx2, kp = jax.random.split(key, 3)
        x1 = jax.random.normal(kx1, (B, T, cfg["lstm_input_size"]), jnp.float32)
        x2 = jax.random.normal(kx2, (B, T, cfg["lstm_input_size"]), jnp.float32)
        params = init_params(kp, cfg)

        layout = build_layout(cfg)
        w_slab, b_slab = pack_params(params, cfg, layout)   # one-time host packing

        fwd = jax.jit(functools.partial(model_forward, cfg=cfg, layout=layout))
        out = jax.block_until_ready(fwd(x1, x2, w_slab, b_slab))

        ref = jax.block_until_ready(ref_forward(x1, x2, params, cfg))
        # bf16 MXU operands (f32 accumulate / gate math) -> slightly looser tol.
        np.testing.assert_allclose(np.asarray(out), np.asarray(ref),
                                   rtol=2e-2, atol=2e-2)

    print("KERNEL_OK")
</pallas_src>

<mosaic_0001>
module attributes {stable_mosaic.version = 11 : i64} {
  func.func @_fused_forward_kernel(%arg0: memref<32x8xf32, #tpu.memory_space<vmem>>, %arg1: memref<232x128xbf16, #tpu.memory_space<vmem>>, %arg2: memref<48x128xf32, #tpu.memory_space<vmem>>, %arg3: memref<2x1xf32, #tpu.memory_space<vmem>>) attributes {dimension_semantics = [], scalar_prefetch = 0 : i64, scratch_operands = 0 : i64, tpu.core_type = #tpu.core_type<tc>} {
    %c0 = arith.constant 0 : index
    %c0_0 = arith.constant 0 : index
    %0 = vector.load %arg0[%c0, %c0_0] : memref<32x8xf32, #tpu.memory_space<vmem>>, vector<32x8xf32>
    %1 = arith.truncf %0 : vector<32x8xf32> to vector<32x8xbf16>
    %c0_1 = arith.constant 0 : index
    %c0_2 = arith.constant 0 : index
    %2 = vector.load %arg1[%c0_1, %c0_2] : memref<232x128xbf16, #tpu.memory_space<vmem>>, vector<8x128xbf16>
    %cst = arith.constant dense<0.000000e+00> : vector<32x128xf32>
    %3 = tpu.matmul %1, %2, %cst {dimension_numbers = #tpu.dot_dimension_numbers<[1], [0], [0], [1], [0, 0, 1, 1], [], []>} : vector<32x8xbf16>, vector<8x128xbf16>, vector<32x128xf32> -> vector<32x128xf32>
    %c0_3 = arith.constant 0 : index
    %c0_4 = arith.constant 0 : index
    %4 = vector.load %arg2[%c0_3, %c0_4] : memref<48x128xf32, #tpu.memory_space<vmem>>, vector<1x128xf32>
    %5 = vector.broadcast %4 : vector<1x128xf32> to vector<32x128xf32>
    %6 = arith.addf %3, %5 : vector<32x128xf32>
    %c8 = arith.constant 8 : index
    %c0_5 = arith.constant 0 : index
    %7 = vector.load %arg1[%c8, %c0_5] : memref<232x128xbf16, #tpu.memory_space<vmem>>, vector<32x128xbf16>
    %cst_6 = arith.constant 0.000000e+00 : f32
    %8 = vector.broadcast %cst_6 : f32 to vector<4x32xf32>
    %9 = vector.extract_strided_slice %6 {offsets = [0, 0], sizes = [4, 128], strides = [1, 1]} : vector<32x128xf32> to vector<4x128xf32>
    %cst_7 = arith.constant 5.000000e-01 : f32
    %10 = vector.broadcast %cst_7 : f32 to vector<4x128xf32>
    %11 = arith.mulf %10, %9 : vector<4x128xf32>
    %12 = math.tanh %11 : vector<4x128xf32>
    %cst_8 = arith.constant 5.000000e-01 : f32
    %13 = vector.broadcast %cst_8 : f32 to vector<4x128xf32>
    %14 = arith.mulf %13, %12 : vector<4x128xf32>
    %cst_9 = arith.constant 5.000000e-01 : f32
    %15 = vector.broadcast %cst_9 : f32 to vector<4x128xf32>
    %16 = arith.addf %14, %15 : vector<4x128xf32>
    %17 = vector.extract_strided_slice %9 {offsets = [0, 64], sizes = [4, 32], strides = [1, 1]} : vector<4x128xf32> to vector<4x32xf32>
    %18 = math.tanh %17 : vector<4x32xf32>
    %19 = vector.extract_strided_slice %16 {offsets = [0, 32], sizes = [4, 32], strides = [1, 1]} : vector<4x128xf32> to vector<4x32xf32>
    %20 = arith.mulf %19, %8 : vector<4x32xf32>
    %21 = vector.extract_strided_slice %16 {offsets = [0, 0], sizes = [4, 32], strides = [1, 1]} : vector<4x128xf32> to vector<4x32xf32>
    %22 = arith.mulf %21, %18 : vector<4x32xf32>
    %23 = arith.addf %20, %22 : vector<4x32xf32>
    %24 = vector.extract_strided_slice %16 {offsets = [0, 96], sizes = [4, 32], strides = [1, 1]} : vector<4x128xf32> to vector<4x32xf32>
    %25 = math.tanh %23 : vector<4x32xf32>
    %26 = arith.mulf %24, %25 : vector<4x32xf32>
    %27 = vector.extract_strided_slice %6 {offsets = [4, 0], sizes = [4, 128], strides = [1, 1]} : vector<32x128xf32> to vector<4x128xf32>
    %28 = arith.truncf %26 : vector<4x32xf32> to vector<4x32xbf16>
    %cst_10 = arith.constant dense<0.000000e+00> : vector<4x128xf32>
    %29 = tpu.matmul %28, %7, %cst_10 {dimension_numbers = #tpu.dot_dimension_numbers<[1], [0], [0], [1], [0, 0, 1, 1], [], []>} : vector<4x32xbf16>, vector<32x128xbf16>, vector<4x128xf32> -> vector<4x128xf32>
    %30 = arith.addf %27, %29 : vector<4x128xf32>
    %cst_11 = arith.constant 5.000000e-01 : f32
    %31 = vector.broadcast %cst_11 : f32 to vector<4x128xf32>
    %32 = arith.mulf %31, %30 : vector<4x128xf32>
    %33 = math.tanh %32 : vector<4x128xf32>
    %cst_12 = arith.constant 5.000000e-01 : f32
    %34 = vector.broadcast %cst_12 : f32 to vector<4x128xf32>
    %35 = arith.mulf %34, %33 : vector<4x128xf32>
    %cst_13 = arith.constant 5.000000e-01 : f32
    %36 = vector.broadcast %cst_13 : f32 to vector<4x128xf32>
    %37 = arith.addf %35, %36 : vector<4x128xf32>
    %38 = vector.extract_strided_slice %30 {offsets = [0, 64], sizes = [4, 32], strides = [1, 1]} : vector<4x128xf32> to vector<4x32xf32>
    %39 = math.tanh %38 : vector<4x32xf32>
    %40 = vector.extract_strided_slice %37 {offsets = [0, 32], sizes = [4, 32], strides = [1, 1]} : vector<4x128xf32> to vector<4x32xf32>
    %41 = arith.mulf %40, %23 : vector<4x32xf32>
    %42 = vector.extract_strided_slice %37 {offsets = [0, 0], sizes = [4, 32], strides = [1, 1]} : vector<4x128xf32> to vector<4x32xf32>
    %43 = arith.mulf %42, %39 : vector<4x32xf32>
    %44 = arith.addf %41, %43 : vector<4x32xf32>
    %45 = vector.extract_strided_slice %37 {offsets = [0, 96], sizes = [4, 32], strides = [1, 1]} : vector<4x128xf32> to vector<4x32xf32>
    %46 = math.tanh %44 : vector<4x32xf32>
    %47 = arith.mulf %45, %46 : vector<4x32xf32>
    %48 = vector.extract_strided_slice %6 {offsets = [8, 0], sizes = [4, 128], strides = [1, 1]} : vector<32x128xf32> to vector<4x128xf32>
    %49 = arith.truncf %47 : vector<4x32xf32> to vector<4x32xbf16>
    %cst_14 = arith.constant dense<0.000000e+00> : vector<4x128xf32>
    %50 = tpu.matmul %49, %7, %cst_14 {dimension_numbers = #tpu.dot_dimension_numbers<[1], [0], [0], [1], [0, 0, 1, 1], [], []>} : vector<4x32xbf16>, vector<32x128xbf16>, vector<4x128xf32> -> vector<4x128xf32>
    %51 = arith.addf %48, %50 : vector<4x128xf32>
    %cst_15 = arith.constant 5.000000e-01 : f32
    %52 = vector.broadcast %cst_15 : f32 to vector<4x128xf32>
    %53 = arith.mulf %52, %51 : vector<4x128xf32>
    %54 = math.tanh %53 : vector<4x128xf32>
    %cst_16 = arith.constant 5.000000e-01 : f32
    %55 = vector.broadcast %cst_16 : f32 to vector<4x128xf32>
    %56 = arith.mulf %55, %54 : vector<4x128xf32>
    %cst_17 = arith.constant 5.000000e-01 : f32
    %57 = vector.broadcast %cst_17 : f32 to vector<4x128xf32>
    %58 = arith.addf %56, %57 : vector<4x128xf32>
    %59 = vector.extract_strided_slice %51 {offsets = [0, 64], sizes = [4, 32], strides = [1, 1]} : vector<4x128xf32> to vector<4x32xf32>
    %60 = math.tanh %59 : vector<4x32xf32>
    %61 = vector.extract_strided_slice %58 {offsets = [0, 32], sizes = [4, 32], strides = [1, 1]} : vector<4x128xf32> to vector<4x32xf32>
    %62 = arith.mulf %61, %44 : vector<4x32xf32>
    %63 = vector.extract_strided_slice %58 {offsets = [0, 0], sizes = [4, 32], strides = [1, 1]} : vector<4x128xf32> to vector<4x32xf32>
    %64 = arith.mulf %63, %60 : vector<4x32xf32>
    %65 = arith.addf %62, %64 : vector<4x32xf32>
    %66 = vector.extract_strided_slice %58 {offsets = [0, 96], sizes = [4, 32], strides = [1, 1]} : vector<4x128xf32> to vector<4x32xf32>
    %67 = math.tanh %65 : vector<4x32xf32>
    %68 = arith.mulf %66, %67 : vector<4x32xf32>
    %69 = vector.extract_strided_slice %6 {offsets = [12, 0], sizes = [4, 128], strides = [1, 1]} : vector<32x128xf32> to vector<4x128xf32>
    %70 = arith.truncf %68 : vector<4x32xf32> to vector<4x32xbf16>
    %cst_18 = arith.constant dense<0.000000e+00> : vector<4x128xf32>
    %71 = tpu.matmul %70, %7, %cst_18 {dimension_numbers = #tpu.dot_dimension_numbers<[1], [0], [0], [1], [0, 0, 1, 1], [], []>} : vector<4x32xbf16>, vector<32x128xbf16>, vector<4x128xf32> -> vector<4x128xf32>
    %72 = arith.addf %69, %71 : vector<4x128xf32>
    %cst_19 = arith.constant 5.000000e-01 : f32
    %73 = vector.broadcast %cst_19 : f32 to vector<4x128xf32>
    %74 = arith.mulf %73, %72 : vector<4x128xf32>
    %75 = math.tanh %74 : vector<4x128xf32>
    %cst_20 = arith.constant 5.000000e-01 : f32
    %76 = vector.broadcast %cst_20 : f32 to vector<4x128xf32>
    %77 = arith.mulf %76, %75 : vector<4x128xf32>
    %cst_21 = arith.constant 5.000000e-01 : f32
    %78 = vector.broadcast %cst_21 : f32 to vector<4x128xf32>
    %79 = arith.addf %77, %78 : vector<4x128xf32>
    %80 = vector.extract_strided_slice %72 {offsets = [0, 64], sizes = [4, 32], strides = [1, 1]} : vector<4x128xf32> to vector<4x32xf32>
    %81 = math.tanh %80 : vector<4x32xf32>
    %82 = vector.extract_strided_slice %79 {offsets = [0, 32], sizes = [4, 32], strides = [1, 1]} : vector<4x128xf32> to vector<4x32xf32>
    %83 = arith.mulf %82, %65 : vector<4x32xf32>
    %84 = vector.extract_strided_slice %79 {offsets = [0, 0], sizes = [4, 32], strides = [1, 1]} : vector<4x128xf32> to vector<4x32xf32>
    %85 = arith.mulf %84, %81 : vector<4x32xf32>
    %86 = arith.addf %83, %85 : vector<4x32xf32>
    %87 = vector.extract_strided_slice %79 {offsets = [0, 96], sizes = [4, 32], strides = [1, 1]} : vector<4x128xf32> to vector<4x32xf32>
    %88 = math.tanh %86 : vector<4x32xf32>
    %89 = arith.mulf %87, %88 : vector<4x32xf32>
    %90 = vector.extract_strided_slice %6 {offsets = [16, 0], sizes = [4, 128], strides = [1, 1]} : vector<32x128xf32> to vector<4x128xf32>
    %91 = arith.truncf %89 : vector<4x32xf32> to vector<4x32xbf16>
    %cst_22 = arith.constant dense<0.000000e+00> : vector<4x128xf32>
    %92 = tpu.matmul %91, %7, %cst_22 {dimension_numbers = #tpu.dot_dimension_numbers<[1], [0], [0], [1], [0, 0, 1, 1], [], []>} : vector<4x32xbf16>, vector<32x128xbf16>, vector<4x128xf32> -> vector<4x128xf32>
    %93 = arith.addf %90, %92 : vector<4x128xf32>
    %cst_23 = arith.constant 5.000000e-01 : f32
    %94 = vector.broadcast %cst_23 : f32 to vector<4x128xf32>
    %95 = arith.mulf %94, %93 : vector<4x128xf32>
    %96 = math.tanh %95 : vector<4x128xf32>
    %cst_24 = arith.constant 5.000000e-01 : f32
    %97 = vector.broadcast %cst_24 : f32 to vector<4x128xf32>
    %98 = arith.mulf %97, %96 : vector<4x128xf32>
    %cst_25 = arith.constant 5.000000e-01 : f32
    %99 = vector.broadcast %cst_25 : f32 to vector<4x128xf32>
    %100 = arith.addf %98, %99 : vector<4x128xf32>
    %101 = vector.extract_strided_slice %93 {offsets = [0, 64], sizes = [4, 32], strides = [1, 1]} : vector<4x128xf32> to vector<4x32xf32>
    %102 = math.tanh %101 : vector<4x32xf32>
    %103 = vector.extract_strided_slice %100 {offsets = [0, 32], sizes = [4, 32], strides = [1, 1]} : vector<4x128xf32> to vector<4x32xf32>
    %104 = arith.mulf %103, %86 : vector<4x32xf32>
    %105 = vector.extract_strided_slice %100 {offsets = [0, 0], sizes = [4, 32], strides = [1, 1]} : vector<4x128xf32> to vector<4x32xf32>
    %106 = arith.mulf %105, %102 : vector<4x32xf32>
    %107 = arith.addf %104, %106 : vector<4x32xf32>
    %108 = vector.extract_strided_slice %100 {offsets = [0, 96], sizes = [4, 32], strides = [1, 1]} : vector<4x128xf32> to vector<4x32xf32>
    %109 = math.tanh %107 : vector<4x32xf32>
    %110 = arith.mulf %108, %109 : vector<4x32xf32>
    %111 = vector.extract_strided_slice %6 {offsets = [20, 0], sizes = [4, 128], strides = [1, 1]} : vector<32x128xf32> to vector<4x128xf32>
    %112 = arith.truncf %110 : vector<4x32xf32> to vector<4x32xbf16>
    %cst_26 = arith.constant dense<0.000000e+00> : vector<4x128xf32>
    %113 = tpu.matmul %112, %7, %cst_26 {dimension_numbers = #tpu.dot_dimension_numbers<[1], [0], [0], [1], [0, 0, 1, 1], [], []>} : vector<4x32xbf16>, vector<32x128xbf16>, vector<4x128xf32> -> vector<4x128xf32>
    %114 = arith.addf %111, %113 : vector<4x128xf32>
    %cst_27 = arith.constant 5.000000e-01 : f32
    %115 = vector.broadcast %cst_27 : f32 to vector<4x128xf32>
    %116 = arith.mulf %115, %114 : vector<4x128xf32>
    %117 = math.tanh %116 : vector<4x128xf32>
    %cst_28 = arith.constant 5.000000e-01 : f32
    %118 = vector.broadcast %cst_28 : f32 to vector<4x128xf32>
    %119 = arith.mulf %118, %117 : vector<4x128xf32>
    %cst_29 = arith.constant 5.000000e-01 : f32
    %120 = vector.broadcast %cst_29 : f32 to vector<4x128xf32>
    %121 = arith.addf %119, %120 : vector<4x128xf32>
    %122 = vector.extract_strided_slice %114 {offsets = [0, 64], sizes = [4, 32], strides = [1, 1]} : vector<4x128xf32> to vector<4x32xf32>
    %123 = math.tanh %122 : vector<4x32xf32>
    %124 = vector.extract_strided_slice %121 {offsets = [0, 32], sizes = [4, 32], strides = [1, 1]} : vector<4x128xf32> to vector<4x32xf32>
    %125 = arith.mulf %124, %107 : vector<4x32xf32>
    %126 = vector.extract_strided_slice %121 {offsets = [0, 0], sizes = [4, 32], strides = [1, 1]} : vector<4x128xf32> to vector<4x32xf32>
    %127 = arith.mulf %126, %123 : vector<4x32xf32>
    %128 = arith.addf %125, %127 : vector<4x32xf32>
    %129 = vector.extract_strided_slice %121 {offsets = [0, 96], sizes = [4, 32], strides = [1, 1]} : vector<4x128xf32> to vector<4x32xf32>
    %130 = math.tanh %128 : vector<4x32xf32>
    %131 = arith.mulf %129, %130 : vector<4x32xf32>
    %132 = vector.extract_strided_slice %6 {offsets = [24, 0], sizes = [4, 128], strides = [1, 1]} : vector<32x128xf32> to vector<4x128xf32>
    %133 = arith.truncf %131 : vector<4x32xf32> to vector<4x32xbf16>
    %cst_30 = arith.constant dense<0.000000e+00> : vector<4x128xf32>
    %134 = tpu.matmul %133, %7, %cst_30 {dimension_numbers = #tpu.dot_dimension_numbers<[1], [0], [0], [1], [0, 0, 1, 1], [], []>} : vector<4x32xbf16>, vector<32x128xbf16>, vector<4x128xf32> -> vector<4x128xf32>
    %135 = arith.addf %132, %134 : vector<4x128xf32>
    %cst_31 = arith.constant 5.000000e-01 : f32
    %136 = vector.broadcast %cst_31 : f32 to vector<4x128xf32>
    %137 = arith.mulf %136, %135 : vector<4x128xf32>
    %138 = math.tanh %137 : vector<4x128xf32>
    %cst_32 = arith.constant 5.000000e-01 : f32
    %139 = vector.broadcast %cst_32 : f32 to vector<4x128xf32>
    %140 = arith.mulf %139, %138 : vector<4x128xf32>
    %cst_33 = arith.constant 5.000000e-01 : f32
    %141 = vector.broadcast %cst_33 : f32 to vector<4x128xf32>
    %142 = arith.addf %140, %141 : vector<4x128xf32>
    %143 = vector.extract_strided_slice %135 {offsets = [0, 64], sizes = [4, 32], strides = [1, 1]} : vector<4x128xf32> to vector<4x32xf32>
    %144 = math.tanh %143 : vector<4x32xf32>
    %145 = vector.extract_strided_slice %142 {offsets = [0, 32], sizes = [4, 32], strides = [1, 1]} : vector<4x128xf32> to vector<4x32xf32>
    %146 = arith.mulf %145, %128 : vector<4x32xf32>
    %147 = vector.extract_strided_slice %142 {offsets = [0, 0], sizes = [4, 32], strides = [1, 1]} : vector<4x128xf32> to vector<4x32xf32>
    %148 = arith.mulf %147, %144 : vector<4x32xf32>
    %149 = arith.addf %146, %148 : vector<4x32xf32>
    %150 = vector.extract_strided_slice %142 {offsets = [0, 96], sizes = [4, 32], strides = [1, 1]} : vector<4x128xf32> to vector<4x32xf32>
    %151 = math.tanh %149 : vector<4x32xf32>
    %152 = arith.mulf %150, %151 : vector<4x32xf32>
    %153 = vector.extract_strided_slice %6 {offsets = [28, 0], sizes = [4, 128], strides = [1, 1]} : vector<32x128xf32> to vector<4x128xf32>
    %154 = arith.truncf %152 : vector<4x32xf32> to vector<4x32xbf16>
    %cst_34 = arith.constant dense<0.000000e+00> : vector<4x128xf32>
    %155 = tpu.matmul %154, %7, %cst_34 {dimension_numbers = #tpu.dot_dimension_numbers<[1], [0], [0], [1], [0, 0, 1, 1], [], []>} : vector<4x32xbf16>, vector<32x128xbf16>, vector<4x128xf32> -> vector<4x128xf32>
    %156 = arith.addf %153, %155 : vector<4x128xf32>
    %cst_35 = arith.constant 5.000000e-01 : f32
    %157 = vector.broadcast %cst_35 : f32 to vector<4x128xf32>
    %158 = arith.mulf %157, %156 : vector<4x128xf32>
    %159 = math.tanh %158 : vector<4x128xf32>
    %cst_36 = arith.constant 5.000000e-01 : f32
    %160 = vector.broadcast %cst_36 : f32 to vector<4x128xf32>
    %161 = arith.mulf %160, %159 : vector<4x128xf32>
    %cst_37 = arith.constant 5.000000e-01 : f32
    %162 = vector.broadcast %cst_37 : f32 to vector<4x128xf32>
    %163 = arith.addf %161, %162 : vector<4x128xf32>
    %164 = vector.extract_strided_slice %156 {offsets = [0, 64], sizes = [4, 32], strides = [1, 1]} : vector<4x128xf32> to vector<4x32xf32>
    %165 = math.tanh %164 : vector<4x32xf32>
    %166 = vector.extract_strided_slice %163 {offsets = [0, 32], sizes = [4, 32], strides = [1, 1]} : vector<4x128xf32> to vector<4x32xf32>
    %167 = arith.mulf %166, %149 : vector<4x32xf32>
    %168 = vector.extract_strided_slice %163 {offsets = [0, 0], sizes = [4, 32], strides = [1, 1]} : vector<4x128xf32> to vector<4x32xf32>
    %169 = arith.mulf %168, %165 : vector<4x32xf32>
    %170 = arith.addf %167, %169 : vector<4x32xf32>
    %171 = vector.extract_strided_slice %163 {offsets = [0, 96], sizes = [4, 32], strides = [1, 1]} : vector<4x128xf32> to vector<4x32xf32>
    %172 = math.tanh %170 : vector<4x32xf32>
    %173 = arith.mulf %171, %172 : vector<4x32xf32>
    %174 = tpu.concatenate %26, %47, %68, %89, %110, %131, %152, %173 in 0 : vector<4x32xf32>, vector<4x32xf32>, vector<4x32xf32>, vector<4x32xf32>, vector<4x32xf32>, vector<4x32xf32>, vector<4x32xf32>, vector<4x32xf32> -> vector<32x32xf32>
    %175 = arith.truncf %174 : vector<32x32xf32> to vector<32x32xbf16>
    %c40 = arith.constant 40 : index
    %c0_38 = arith.constant 0 : index
    %176 = vector.load %arg1[%c40, %c0_38] : memref<232x128xbf16, #tpu.memory_space<vmem>>, vector<32x128xbf16>
    %cst_39 = arith.constant dense<0.000000e+00> : vector<32x128xf32>
    %177 = tpu.matmul %175, %176, %cst_39 {dimension_numbers = #tpu.dot_dimension_numbers<[1], [0], [0], [1], [0, 0, 1, 1], [], []>} : vector<32x32xbf16>, vector<32x128xbf16>, vector<32x128xf32> -> vector<32x128xf32>
    %c8_40 = arith.constant 8 : index
    %c0_41 = arith.constant 0 : index
    %178 = vector.load %arg2[%c8_40, %c0_41] : memref<48x128xf32, #tpu.memory_space<vmem>>, vector<1x128xf32>
    %179 = vector.broadcast %178 : vector<1x128xf32> to vector<32x128xf32>
    %180 = arith.addf %177, %179 : vector<32x128xf32>
    %c72 = arith.constant 72 : index
    %c0_42 = arith.constant 0 : index
    %181 = vector.load %arg1[%c72, %c0_42] : memref<232x128xbf16, #tpu.memory_space<vmem>>, vector<32x128xbf16>
    %cst_43 = arith.constant 0.000000e+00 : f32
    %182 = vector.broadcast %cst_43 : f32 to vector<4x32xf32>
    %183 = vector.extract_strided_slice %180 {offsets = [0, 0], sizes = [4, 128], strides = [1, 1]} : vector<32x128xf32> to vector<4x128xf32>
    %cst_44 = arith.constant 5.000000e-01 : f32
    %184 = vector.broadcast %cst_44 : f32 to vector<4x128xf32>
    %185 = arith.mulf %184, %183 : vector<4x128xf32>
    %186 = math.tanh %185 : vector<4x128xf32>
    %cst_45 = arith.constant 5.000000e-01 : f32
    %187 = vector.broadcast %cst_45 : f32 to vector<4x128xf32>
    %188 = arith.mulf %187, %186 : vector<4x128xf32>
    %cst_46 = arith.constant 5.000000e-01 : f32
    %189 = vector.broadcast %cst_46 : f32 to vector<4x128xf32>
    %190 = arith.addf %188, %189 : vector<4x128xf32>
    %191 = vector.extract_strided_slice %183 {offsets = [0, 64], sizes = [4, 32], strides = [1, 1]} : vector<4x128xf32> to vector<4x32xf32>
    %192 = math.tanh %191 : vector<4x32xf32>
    %193 = vector.extract_strided_slice %190 {offsets = [0, 32], sizes = [4, 32], strides = [1, 1]} : vector<4x128xf32> to vector<4x32xf32>
    %194 = arith.mulf %193, %182 : vector<4x32xf32>
    %195 = vector.extract_strided_slice %190 {offsets = [0, 0], sizes = [4, 32], strides = [1, 1]} : vector<4x128xf32> to vector<4x32xf32>
    %196 = arith.mulf %195, %192 : vector<4x32xf32>
    %197 = arith.addf %194, %196 : vector<4x32xf32>
    %198 = vector.extract_strided_slice %190 {offsets = [0, 96], sizes = [4, 32], strides = [1, 1]} : vector<4x128xf32> to vector<4x32xf32>
    %199 = math.tanh %197 : vector<4x32xf32>
    %200 = arith.mulf %198, %199 : vector<4x32xf32>
    %201 = vector.extract_strided_slice %180 {offsets = [4, 0], sizes = [4, 128], strides = [1, 1]} : vector<32x128xf32> to vector<4x128xf32>
    %202 = arith.truncf %200 : vector<4x32xf32> to vector<4x32xbf16>
    %cst_47 = arith.constant dense<0.000000e+00> : vector<4x128xf32>
    %203 = tpu.matmul %202, %181, %cst_47 {dimension_numbers = #tpu.dot_dimension_numbers<[1], [0], [0], [1], [0, 0, 1, 1], [], []>} : vector<4x32xbf16>, vector<32x128xbf16>, vector<4x128xf32> -> vector<4x128xf32>
    %204 = arith.addf %201, %203 : vector<4x128xf32>
    %cst_48 = arith.constant 5.000000e-01 : f32
    %205 = vector.broadcast %cst_48 : f32 to vector<4x128xf32>
    %206 = arith.mulf %205, %204 : vector<4x128xf32>
    %207 = math.tanh %206 : vector<4x128xf32>
    %cst_49 = arith.constant 5.000000e-01 : f32
    %208 = vector.broadcast %cst_49 : f32 to vector<4x128xf32>
    %209 = arith.mulf %208, %207 : vector<4x128xf32>
    %cst_50 = arith.constant 5.000000e-01 : f32
    %210 = vector.broadcast %cst_50 : f32 to vector<4x128xf32>
    %211 = arith.addf %209, %210 : vector<4x128xf32>
    %212 = vector.extract_strided_slice %204 {offsets = [0, 64], sizes = [4, 32], strides = [1, 1]} : vector<4x128xf32> to vector<4x32xf32>
    %213 = math.tanh %212 : vector<4x32xf32>
    %214 = vector.extract_strided_slice %211 {offsets = [0, 32], sizes = [4, 32], strides = [1, 1]} : vector<4x128xf32> to vector<4x32xf32>
    %215 = arith.mulf %214, %197 : vector<4x32xf32>
    %216 = vector.extract_strided_slice %211 {offsets = [0, 0], sizes = [4, 32], strides = [1, 1]} : vector<4x128xf32> to vector<4x32xf32>
    %217 = arith.mulf %216, %213 : vector<4x32xf32>
    %218 = arith.addf %215, %217 : vector<4x32xf32>
    %219 = vector.extract_strided_slice %211 {offsets = [0, 96], sizes = [4, 32], strides = [1, 1]} : vector<4x128xf32> to vector<4x32xf32>
    %220 = math.tanh %218 : vector<4x32xf32>
    %221 = arith.mulf %219, %220 : vector<4x32xf32>
    %222 = vector.extract_strided_slice %180 {offsets = [8, 0], sizes = [4, 128], strides = [1, 1]} : vector<32x128xf32> to vector<4x128xf32>
    %223 = arith.truncf %221 : vector<4x32xf32> to vector<4x32xbf16>
    %cst_51 = arith.constant dense<0.000000e+00> : vector<4x128xf32>
    %224 = tpu.matmul %223, %181, %cst_51 {dimension_numbers = #tpu.dot_dimension_numbers<[1], [0], [0], [1], [0, 0, 1, 1], [], []>} : vector<4x32xbf16>, vector<32x128xbf16>, vector<4x128xf32> -> vector<4x128xf32>
    %225 = arith.addf %222, %224 : vector<4x128xf32>
    %cst_52 = arith.constant 5.000000e-01 : f32
    %226 = vector.broadcast %cst_52 : f32 to vector<4x128xf32>
    %227 = arith.mulf %226, %225 : vector<4x128xf32>
    %228 = math.tanh %227 : vector<4x128xf32>
    %cst_53 = arith.constant 5.000000e-01 : f32
    %229 = vector.broadcast %cst_53 : f32 to vector<4x128xf32>
    %230 = arith.mulf %229, %228 : vector<4x128xf32>
    %cst_54 = arith.constant 5.000000e-01 : f32
    %231 = vector.broadcast %cst_54 : f32 to vector<4x128xf32>
    %232 = arith.addf %230, %231 : vector<4x128xf32>
    %233 = vector.extract_strided_slice %225 {offsets = [0, 64], sizes = [4, 32], strides = [1, 1]} : vector<4x128xf32> to vector<4x32xf32>
    %234 = math.tanh %233 : vector<4x32xf32>
    %235 = vector.extract_strided_slice %232 {offsets = [0, 32], sizes = [4, 32], strides = [1, 1]} : vector<4x128xf32> to vector<4x32xf32>
    %236 = arith.mulf %235, %218 : vector<4x32xf32>
    %237 = vector.extract_strided_slice %232 {offsets = [0, 0], sizes = [4, 32], strides = [1, 1]} : vector<4x128xf32> to vector<4x32xf32>
    %238 = arith.mulf %237, %234 : vector<4x32xf32>
    %239 = arith.addf %236, %238 : vector<4x32xf32>
    %240 = vector.extract_strided_slice %232 {offsets = [0, 96], sizes = [4, 32], strides = [1, 1]} : vector<4x128xf32> to vector<4x32xf32>
    %241 = math.tanh %239 : vector<4x32xf32>
    %242 = arith.mulf %240, %241 : vector<4x32xf32>
    %243 = vector.extract_strided_slice %180 {offsets = [12, 0], sizes = [4, 128], strides = [1, 1]} : vector<32x128xf32> to vector<4x128xf32>
    %244 = arith.truncf %242 : vector<4x32xf32> to vector<4x32xbf16>
    %cst_55 = arith.constant dense<0.000000e+00> : vector<4x128xf32>
    %245 = tpu.matmul %244, %181, %cst_55 {dimension_numbers = #tpu.dot_dimension_numbers<[1], [0], [0], [1], [0, 0, 1, 1], [], []>} : vector<4x32xbf16>, vector<32x128xbf16>, vector<4x128xf32> -> vector<4x128xf32>
    %246 = arith.addf %243, %245 : vector<4x128xf32>
    %cst_56 = arith.constant 5.000000e-01 : f32
    %247 = vector.broadcast %cst_56 : f32 to vector<4x128xf32>
    %248 = arith.mulf %247, %246 : vector<4x128xf32>
    %249 = math.tanh %248 : vector<4x128xf32>
    %cst_57 = arith.constant 5.000000e-01 : f32
    %250 = vector.broadcast %cst_57 : f32 to vector<4x128xf32>
    %251 = arith.mulf %250, %249 : vector<4x128xf32>
    %cst_58 = arith.constant 5.000000e-01 : f32
    %252 = vector.broadcast %cst_58 : f32 to vector<4x128xf32>
    %253 = arith.addf %251, %252 : vector<4x128xf32>
    %254 = vector.extract_strided_slice %246 {offsets = [0, 64], sizes = [4, 32], strides = [1, 1]} : vector<4x128xf32> to vector<4x32xf32>
    %255 = math.tanh %254 : vector<4x32xf32>
    %256 = vector.extract_strided_slice %253 {offsets = [0, 32], sizes = [4, 32], strides = [1, 1]} : vector<4x128xf32> to vector<4x32xf32>
    %257 = arith.mulf %256, %239 : vector<4x32xf32>
    %258 = vector.extract_strided_slice %253 {offsets = [0, 0], sizes = [4, 32], strides = [1, 1]} : vector<4x128xf32> to vector<4x32xf32>
    %259 = arith.mulf %258, %255 : vector<4x32xf32>
    %260 = arith.addf %257, %259 : vector<4x32xf32>
    %261 = vector.extract_strided_slice %253 {offsets = [0, 96], sizes = [4, 32], strides = [1, 1]} : vector<4x128xf32> to vector<4x32xf32>
    %262 = math.tanh %260 : vector<4x32xf32>
    %263 = arith.mulf %261, %262 : vector<4x32xf32>
    %264 = vector.extract_strided_slice %180 {offsets = [16, 0], sizes = [4, 128], strides = [1, 1]} : vector<32x128xf32> to vector<4x128xf32>
    %265 = arith.truncf %263 : vector<4x32xf32> to vector<4x32xbf16>
    %cst_59 = arith.constant dense<0.000000e+00> : vector<4x128xf32>
    %266 = tpu.matmul %265, %181, %cst_59 {dimension_numbers = #tpu.dot_dimension_numbers<[1], [0], [0], [1], [0, 0, 1, 1], [], []>} : vector<4x32xbf16>, vector<32x128xbf16>, vector<4x128xf32> -> vector<4x128xf32>
    %267 = arith.addf %264, %266 : vector<4x128xf32>
    %cst_60 = arith.constant 5.000000e-01 : f32
    %268 = vector.broadcast %cst_60 : f32 to vector<4x128xf32>
    %269 = arith.mulf %268, %267 : vector<4x128xf32>
    %270 = math.tanh %269 : vector<4x128xf32>
    %cst_61 = arith.constant 5.000000e-01 : f32
    %271 = vector.broadcast %cst_61 : f32 to vector<4x128xf32>
    %272 = arith.mulf %271, %270 : vector<4x128xf32>
    %cst_62 = arith.constant 5.000000e-01 : f32
    %273 = vector.broadcast %cst_62 : f32 to vector<4x128xf32>
    %274 = arith.addf %272, %273 : vector<4x128xf32>
    %275 = vector.extract_strided_slice %267 {offsets = [0, 64], sizes = [4, 32], strides = [1, 1]} : vector<4x128xf32> to vector<4x32xf32>
    %276 = math.tanh %275 : vector<4x32xf32>
    %277 = vector.extract_strided_slice %274 {offsets = [0, 32], sizes = [4, 32], strides = [1, 1]} : vector<4x128xf32> to vector<4x32xf32>
    %278 = arith.mulf %277, %260 : vector<4x32xf32>
    %279 = vector.extract_strided_slice %274 {offsets = [0, 0], sizes = [4, 32], strides = [1, 1]} : vector<4x128xf32> to vector<4x32xf32>
    %280 = arith.mulf %279, %276 : vector<4x32xf32>
    %281 = arith.addf %278, %280 : vector<4x32xf32>
    %282 = vector.extract_strided_slice %274 {offsets = [0, 96], sizes = [4, 32], strides = [1, 1]} : vector<4x128xf32> to vector<4x32xf32>
    %283 = math.tanh %281 : vector<4x32xf32>
    %284 = arith.mulf %282, %283 : vector<4x32xf32>
    %285 = vector.extract_strided_slice %180 {offsets = [20, 0], sizes = [4, 128], strides = [1, 1]} : vector<32x128xf32> to vector<4x128xf32>
    %286 = arith.truncf %284 : vector<4x32xf32> to vector<4x32xbf16>
    %cst_63 = arith.constant dense<0.000000e+00> : vector<4x128xf32>
    %287 = tpu.matmul %286, %181, %cst_63 {dimension_numbers = #tpu.dot_dimension_numbers<[1], [0], [0], [1], [0, 0, 1, 1], [], []>} : vector<4x32xbf16>, vector<32x128xbf16>, vector<4x128xf32> -> vector<4x128xf32>
    %288 = arith.addf %285, %287 : vector<4x128xf32>
    %cst_64 = arith.constant 5.000000e-01 : f32
    %289 = vector.broadcast %cst_64 : f32 to vector<4x128xf32>
    %290 = arith.mulf %289, %288 : vector<4x128xf32>
    %291 = math.tanh %290 : vector<4x128xf32>
    %cst_65 = arith.constant 5.000000e-01 : f32
    %292 = vector.broadcast %cst_65 : f32 to vector<4x128xf32>
    %293 = arith.mulf %292, %291 : vector<4x128xf32>
    %cst_66 = arith.constant 5.000000e-01 : f32
    %294 = vector.broadcast %cst_66 : f32 to vector<4x128xf32>
    %295 = arith.addf %293, %294 : vector<4x128xf32>
    %296 = vector.extract_strided_slice %288 {offsets = [0, 64], sizes = [4, 32], strides = [1, 1]} : vector<4x128xf32> to vector<4x32xf32>
    %297 = math.tanh %296 : vector<4x32xf32>
    %298 = vector.extract_strided_slice %295 {offsets = [0, 32], sizes = [4, 32], strides = [1, 1]} : vector<4x128xf32> to vector<4x32xf32>
    %299 = arith.mulf %298, %281 : vector<4x32xf32>
    %300 = vector.extract_strided_slice %295 {offsets = [0, 0], sizes = [4, 32], strides = [1, 1]} : vector<4x128xf32> to vector<4x32xf32>
    %301 = arith.mulf %300, %297 : vector<4x32xf32>
    %302 = arith.addf %299, %301 : vector<4x32xf32>
    %303 = vector.extract_strided_slice %295 {offsets = [0, 96], sizes = [4, 32], strides = [1, 1]} : vector<4x128xf32> to vector<4x32xf32>
    %304 = math.tanh %302 : vector<4x32xf32>
    %305 = arith.mulf %303, %304 : vector<4x32xf32>
    %306 = vector.extract_strided_slice %180 {offsets = [24, 0], sizes = [4, 128], strides = [1, 1]} : vector<32x128xf32> to vector<4x128xf32>
    %307 = arith.truncf %305 : vector<4x32xf32> to vector<4x32xbf16>
    %cst_67 = arith.constant dense<0.000000e+00> : vector<4x128xf32>
    %308 = tpu.matmul %307, %181, %cst_67 {dimension_numbers = #tpu.dot_dimension_numbers<[1], [0], [0], [1], [0, 0, 1, 1], [], []>} : vector<4x32xbf16>, vector<32x128xbf16>, vector<4x128xf32> -> vector<4x128xf32>
    %309 = arith.addf %306, %308 : vector<4x128xf32>
    %cst_68 = arith.constant 5.000000e-01 : f32
    %310 = vector.broadcast %cst_68 : f32 to vector<4x128xf32>
    %311 = arith.mulf %310, %309 : vector<4x128xf32>
    %312 = math.tanh %311 : vector<4x128xf32>
    %cst_69 = arith.constant 5.000000e-01 : f32
    %313 = vector.broadcast %cst_69 : f32 to vector<4x128xf32>
    %314 = arith.mulf %313, %312 : vector<4x128xf32>
    %cst_70 = arith.constant 5.000000e-01 : f32
    %315 = vector.broadcast %cst_70 : f32 to vector<4x128xf32>
    %316 = arith.addf %314, %315 : vector<4x128xf32>
    %317 = vector.extract_strided_slice %309 {offsets = [0, 64], sizes = [4, 32], strides = [1, 1]} : vector<4x128xf32> to vector<4x32xf32>
    %318 = math.tanh %317 : vector<4x32xf32>
    %319 = vector.extract_strided_slice %316 {offsets = [0, 32], sizes = [4, 32], strides = [1, 1]} : vector<4x128xf32> to vector<4x32xf32>
    %320 = arith.mulf %319, %302 : vector<4x32xf32>
    %321 = vector.extract_strided_slice %316 {offsets = [0, 0], sizes = [4, 32], strides = [1, 1]} : vector<4x128xf32> to vector<4x32xf32>
    %322 = arith.mulf %321, %318 : vector<4x32xf32>
    %323 = arith.addf %320, %322 : vector<4x32xf32>
    %324 = vector.extract_strided_slice %316 {offsets = [0, 96], sizes = [4, 32], strides = [1, 1]} : vector<4x128xf32> to vector<4x32xf32>
    %325 = math.tanh %323 : vector<4x32xf32>
    %326 = arith.mulf %324, %325 : vector<4x32xf32>
    %327 = vector.extract_strided_slice %180 {offsets = [28, 0], sizes = [4, 128], strides = [1, 1]} : vector<32x128xf32> to vector<4x128xf32>
    %328 = arith.truncf %326 : vector<4x32xf32> to vector<4x32xbf16>
    %cst_71 = arith.constant dense<0.000000e+00> : vector<4x128xf32>
    %329 = tpu.matmul %328, %181, %cst_71 {dimension_numbers = #tpu.dot_dimension_numbers<[1], [0], [0], [1], [0, 0, 1, 1], [], []>} : vector<4x32xbf16>, vector<32x128xbf16>, vector<4x128xf32> -> vector<4x128xf32>
    %330 = arith.addf %327, %329 : vector<4x128xf32>
    %cst_72 = arith.constant 5.000000e-01 : f32
    %331 = vector.broadcast %cst_72 : f32 to vector<4x128xf32>
    %332 = arith.mulf %331, %330 : vector<4x128xf32>
    %333 = math.tanh %332 : vector<4x128xf32>
    %cst_73 = arith.constant 5.000000e-01 : f32
    %334 = vector.broadcast %cst_73 : f32 to vector<4x128xf32>
    %335 = arith.mulf %334, %333 : vector<4x128xf32>
    %cst_74 = arith.constant 5.000000e-01 : f32
    %336 = vector.broadcast %cst_74 : f32 to vector<4x128xf32>
    %337 = arith.addf %335, %336 : vector<4x128xf32>
    %338 = vector.extract_strided_slice %330 {offsets = [0, 64], sizes = [4, 32], strides = [1, 1]} : vector<4x128xf32> to vector<4x32xf32>
    %339 = math.tanh %338 : vector<4x32xf32>
    %340 = vector.extract_strided_slice %337 {offsets = [0, 32], sizes = [4, 32], strides = [1, 1]} : vector<4x128xf32> to vector<4x32xf32>
    %341 = arith.mulf %340, %323 : vector<4x32xf32>
    %342 = vector.extract_strided_slice %337 {offsets = [0, 0], sizes = [4, 32], strides = [1, 1]} : vector<4x128xf32> to vector<4x32xf32>
    %343 = arith.mulf %342, %339 : vector<4x32xf32>
    %344 = arith.addf %341, %343 : vector<4x32xf32>
    %345 = vector.extract_strided_slice %337 {offsets = [0, 96], sizes = [4, 32], strides = [1, 1]} : vector<4x128xf32> to vector<4x32xf32>
    %346 = math.tanh %344 : vector<4x32xf32>
    %347 = arith.mulf %345, %346 : vector<4x32xf32>
    %348 = arith.truncf %347 : vector<4x32xf32> to vector<4x32xbf16>
    %c104 = arith.constant 104 : index
    %c0_75 = arith.constant 0 : index
    %349 = vector.load %arg1[%c104, %c0_75] : memref<232x128xbf16, #tpu.memory_space<vmem>>, vector<32x16xbf16>
    %cst_76 = arith.constant dense<0.000000e+00> : vector<4x16xf32>
    %350 = tpu.matmul %348, %349, %cst_76 {dimension_numbers = #tpu.dot_dimension_numbers<[1], [0], [0], [1], [0, 0, 1, 1], [], []>} : vector<4x32xbf16>, vector<32x16xbf16>, vector<4x16xf32> -> vector<4x16xf32>
    %c16 = arith.constant 16 : index
    %c0_77 = arith.constant 0 : index
    %351 = vector.load %arg2[%c16, %c0_77] : memref<48x128xf32, #tpu.memory_space<vmem>>, vector<1x16xf32>
    %352 = vector.broadcast %351 : vector<1x16xf32> to vector<4x16xf32>
    %353 = arith.addf %350, %352 : vector<4x16xf32>
    %354 = math.tanh %353 : vector<4x16xf32>
    %355 = vector.extract_strided_slice %354 {offsets = [0, 0], sizes = [2, 16], strides = [1, 1]} : vector<4x16xf32> to vector<2x16xf32>
    %356 = vector.extract_strided_slice %354 {offsets = [2, 0], sizes = [2, 16], strides = [1, 1]} : vector<4x16xf32> to vector<2x16xf32>
    %357 = arith.subf %355, %356 : vector<2x16xf32>
    %358 = math.absf %357 : vector<2x16xf32>
    %359 = arith.mulf %355, %356 : vector<2x16xf32>
    %360 = tpu.concatenate %358, %359 in 1 : vector<2x16xf32>, vector<2x16xf32> -> vector<2x32xf32>
    %361 = arith.truncf %360 : vector<2x32xf32> to vector<2x32xbf16>
    %c136 = arith.constant 136 : index
    %c0_78 = arith.constant 0 : index
    %362 = vector.load %arg1[%c136, %c0_78] : memref<232x128xbf16, #tpu.memory_space<vmem>>, vector<32x32xbf16>
    %cst_79 = arith.constant dense<0.000000e+00> : vector<2x32xf32>
    %363 = tpu.matmul %361, %362, %cst_79 {dimension_numbers = #tpu.dot_dimension_numbers<[1], [0], [0], [1], [0, 0, 1, 1], [], []>} : vector<2x32xbf16>, vector<32x32xbf16>, vector<2x32xf32> -> vector<2x32xf32>
    %c24 = arith.constant 24 : index
    %c0_80 = arith.constant 0 : index
    %364 = vector.load %arg2[%c24, %c0_80] : memref<48x128xf32, #tpu.memory_space<vmem>>, vector<1x32xf32>
    %365 = vector.broadcast %364 : vector<1x32xf32> to vector<2x32xf32>
    %366 = arith.addf %363, %365 : vector<2x32xf32>
    %cst_81 = arith.constant 0.000000e+00 : f32
    %367 = vector.broadcast %cst_81 : f32 to vector<2x32xf32>
    %368 = arith.maximumf %366, %367 : vector<2x32xf32>
    %369 = arith.truncf %368 : vector<2x32xf32> to vector<2x32xbf16>
    %c168 = arith.constant 168 : index
    %c0_82 = arith.constant 0 : index
    %370 = vector.load %arg1[%c168, %c0_82] : memref<232x128xbf16, #tpu.memory_space<vmem>>, vector<32x32xbf16>
    %cst_83 = arith.constant dense<0.000000e+00> : vector<2x32xf32>
    %371 = tpu.matmul %369, %370, %cst_83 {dimension_numbers = #tpu.dot_dimension_numbers<[1], [0], [0], [1], [0, 0, 1, 1], [], []>} : vector<2x32xbf16>, vector<32x32xbf16>, vector<2x32xf32> -> vector<2x32xf32>
    %c32 = arith.constant 32 : index
    %c0_84 = arith.constant 0 : index
    %372 = vector.load %arg2[%c32, %c0_84] : memref<48x128xf32, #tpu.memory_space<vmem>>, vector<1x32xf32>
    %373 = vector.broadcast %372 : vector<1x32xf32> to vector<2x32xf32>
    %374 = arith.addf %371, %373 : vector<2x32xf32>
    %cst_85 = arith.constant 0.000000e+00 : f32
    %375 = vector.broadcast %cst_85 : f32 to vector<2x32xf32>
    %376 = arith.maximumf %374, %375 : vector<2x32xf32>
    %377 = arith.truncf %376 : vector<2x32xf32> to vector<2x32xbf16>
    %c200 = arith.constant 200 : index
    %c0_86 = arith.constant 0 : index
    %378 = vector.load %arg1[%c200, %c0_86] : memref<232x128xbf16, #tpu.memory_space<vmem>>, vector<32x1xbf16>
    %cst_87 = arith.constant dense<0.000000e+00> : vector<2x1xf32>
    %379 = tpu.matmul %377, %378, %cst_87 {dimension_numbers = #tpu.dot_dimension_numbers<[1], [0], [0], [1], [0, 0, 1, 1], [], []>} : vector<2x32xbf16>, vector<32x1xbf16>, vector<2x1xf32> -> vector<2x1xf32>
    %c40_88 = arith.constant 40 : index
    %c0_89 = arith.constant 0 : index
    %380 = vector.load %arg2[%c40_88, %c0_89] : memref<48x128xf32, #tpu.memory_space<vmem>>, vector<1x1xf32>
    %381 = vector.broadcast %380 : vector<1x1xf32> to vector<2x1xf32>
    %382 = arith.addf %379, %381 : vector<2x1xf32>
    %c0_90 = arith.constant 0 : index
    %c0_91 = arith.constant 0 : index
    %383 = vector.load %arg3[%c0_90, %c0_91] : memref<2x1xf32, #tpu.memory_space<vmem>>, vector<2x1xf32>
    tpu.vector_store %arg3[%c0_90, %c0_91], %382 {strides = array<i32>} : memref<2x1xf32, #tpu.memory_space<vmem>>, vector<2x1xf32>,
    return
  }
}

</mosaic_0001>

<llo_original>
// kernel: model_forward.1
$region0: #{model_forward.1}
  #allocation0 [shape = 'u32[]', space=smem, size = 0x4, offset = 0x4, fixed_abs, tag = 'smem constant byte address 0x4 - core index']
  #allocation1 [shape = 'u32[144,128]{1,0:T(1,128)}', space=vmem, size = 0x12000, scoped, tag = 'internal scratch']
  %s0 = inlined_call_operand.vmem [shape: f32[32,8], index: 0, kind: input, shape index: {}]
  %s1 = inlined_call_operand.vmem [shape: bf16[232,128], index: 1, kind: input, shape index: {}]
  %s2 = inlined_call_operand.hbm [shape: f32[48,128], index: 2, kind: input, shape index: {}]
  %s3 = inlined_call_operand.vmem [shape: f32[2,1], index: 3, kind: output, shape index: {}]
  %s4 = sld [smem:[#allocation0]]
  $region26: #{model_forward.1} parent=0
    _
  %s6 = ssub.s32 1, %s4
  %s7 = scalar_select 0, %s6, %s4
  $region1: #{model_forward.1} parent=0
    #allocation2 [shape = 'u8[24576]{0}', space=vmem, size = 0x6000, scoped, tag = 'input window, operand 2, single buffered']
    #allocation3 [shape = 's32[1]{0}', space=sflag, size = 0x4, scoped, tag = 'scoped memory for model_forward.1']
    %8 = vsyncpa [#allocation3], 0
    // Predicated region
    $region2: #{model_forward.1} parent=1 // pred_check
      _
    $region3: #{model_forward.1} parent=1 // pred_check_branch
      %10 = sbr.rel (0) target = $region5
    $region4: #{model_forward.1} parent=1 // pred_region
      _
    $region5: #{model_forward.1} parent=1 // pred_fallthru
      _
    // Predicated region
    $region6: #{model_forward.1} parent=1 // pred_check
      _
    $region7: #{model_forward.1} parent=1 // pred_check_branch
      %12 = sbr.rel (0) target = $region9
    $region8: #{model_forward.1} parent=1 // pred_region
      _
    $region9: #{model_forward.1} parent=1 // pred_fallthru
      _
    // Predicated region
    $region10: #{model_forward.1} parent=1 // pred_check
      _
    $region11: #{model_forward.1} parent=1 // pred_check_branch
      %14 = sbr.rel (0) target = $region13
    $region12: #{model_forward.1} parent=1 // pred_region
      %s16 = ssub.s32 768, 768
      %17 = vsyncadd [#allocation3], %s16
      %s18 = sshll.u32 [#allocation2], 4
      %s19 = int_to_ptr.vmem [resolvable:$true] %s18
      %24 = dma.hbm_to_vmem [thread:$0]  %s2, 768, %s19, [#allocation3], 128, 128, 8
    $region13: #{model_forward.1} parent=1 // pred_fallthru
      _
    // Predicated region
    $region14: #{model_forward.1} parent=1 // pred_check
      _
    $region15: #{model_forward.1} parent=1 // pred_check_branch
      %26 = sbr.rel (0) target = $region17
    $region16: #{model_forward.1} parent=1 // pred_region
      %27 = dma.done [#allocation3], 768
    $region17: #{model_forward.1} parent=1 // pred_fallthru
      _
    %v29 = vld [vmem:[%s0] sm:$0xff]
    %v30 = vld [vmem:[%s0 + $0x8] sm:$0xff]
    %v31 = vld [vmem:[%s0 + $0x10] sm:$0xff]
    %v32 = vld [vmem:[%s0 + $0x18] sm:$0xff]
    %v33 = vpack.c.bf16 %v30, %v29
    %v34 = vpack.c.bf16 %v32, %v31
    %v35 = vld [vmem:[%s1] sm:$0xf]
    %v36 = vld [vmem:[#allocation2] sm:$0x1]
    %v37 = vlaneseq
    %v38 = vshrl.u32 %v37, 7
    %v39 = vsub.s32 0, %v38
    %v40 = vrot.slane %v36, %v39
    %vm41 = vcmask 64512
    %v43 = vsel %vm41, %v33, 0
    %v46 = vsel %vm41, %v34, 0
    %vm48 = vcmask 1043456
    %v50 = vsel %vm48, %v35, 0
    %52 = vmatprep.subr.bf16.mxu0 0
    %53 = vmatpush1.bf16.msra.mxu0 0
    %54 = vmatprep.subr.bf16.mxu0 0
    %55 = vmatpush1.bf16.msra.mxu0 0
    %56 = vmatprep.subr.bf16.mxu0 0
    %57 = vmatpush1.bf16.msra.mxu0 0
    %58 = vmatprep.subr.bf16.mxu0 0
    %59 = vmatpush1.bf16.msra.mxu0 0
    %60 = vmatprep.subr.bf16.mxu0 0
    %61 = vmatpush1.bf16.msra.mxu0 0
    %62 = vmatprep.subr.bf16.mxu0 0
    %63 = vmatpush1.bf16.msra.mxu0 0
    %64 = vmatprep.subr.bf16.mxu0 0
    %65 = vmatpush1.bf16.msra.mxu0 0
    %66 = vmatprep.subr.bf16.mxu0 0
    %67 = vmatpush1.bf16.msra.mxu0 %v50
    %68 = vmatprep.subr.bf16.mxu0 0
    %69 = vmatpush2.bf16.msra.mxu0 0
    %70 = vmatprep.subr.bf16.mxu0 0
    %71 = vmatpush2.bf16.msra.mxu0 0
    %72 = vmatprep.subr.bf16.mxu0 0
    %73 = vmatpush2.bf16.msra.mxu0 0
    %74 = vmatprep.subr.bf16.mxu0 0
    %75 = vmatpush2.bf16.msra.mxu0 0
    %76 = vmatprep.subr.bf16.mxu0 0
    %77 = vmatpush2.bf16.msra.mxu0 0
    %78 = vmatprep.subr.bf16.mxu0 0
    %79 = vmatpush2.bf16.msra.mxu0 0
    %80 = vmatprep.subr.bf16.mxu0 0
    %81 = vmatpush2.bf16.msra.mxu0 0
    %82 = vmatprep.subr.bf16.mxu0 0
    %83 = vmatpush2.bf16.msra.mxu0 0
    %84 = vmatprep.mubr.bf16.mxu0 0
    %85 = vmatmul.mubr.bf16.gmra.mxu0 %v43
    %v86 = vpop.f32.mrf.mxu0
    %v87 = vadd.f32 %v40, %v86
    %v88 = vpop.f32.mrf.mxu0
    %v89 = vpop.f32.mrf.mxu0
    %v90 = vadd.f32 %v40, %v89
    %v91 = vpop.f32.mrf.mxu0
    %92 = vmatprep.mubr.bf16.mxu0 0
    %93 = vmatmul.mubr.bf16.gmra.mxu0 %v46
    %v94 = vpop.f32.mrf.mxu0
    %v95 = vadd.f32 %v40, %v94
    %v96 = vpop.f32.mrf.mxu0
    %v97 = vpop.f32.mrf.mxu0
    %v98 = vadd.f32 %v40, %v97
    %v99 = vpop.f32.mrf.mxu0
    %100 = vdwg.mxu0
    %v101 = vld [vmem:[%s1 + $0x4] sm:$0xf]
    %v102 = vld [vmem:[%s1 + $0x8] sm:$0xf]
    %v103 = vld [vmem:[%s1 + $0xc] sm:$0xf]
    %v104 = vld [vmem:[%s1 + $0x10] sm:$0xf]
    %v105 = vmul.f32 %v87, 0.5
    %v106 = vtanh.pop %v105
    %v107 = vmul.f32 %v106, 0.5
    %v108 = vadd.f32 %v107, 0.5
    %v109 = vtanh.pop %v87
    %v110 = vmul.f32 %v108, 0.0
    %112 = vrot.lane.b32.xlu0 %v109, 64
    %v113 = vpop.permute.xlu0 %112
    %v115 = vmul.f32 %v108, %v113
    %117 = vrot.lane.b32.xlu0 %v115, 32
    %v118 = vpop.permute.xlu0 %117
    %v120 = vadd.f32 %v110, %v118
    %v121 = vtanh.pop %v120
    %123 = vrot.lane.b32.xlu0 %v121, 64
    %v124 = vpop.permute.xlu0 %123
    %v126 = vmul.f32 %v108, %v124
    %v127 = vpack.c.bf16 %v126, %v126
    %129 = vrot.lane.b32.xlu0 %v127, 32
    %v130 = vpop.permute.xlu0 %129
    %v135 = vunpack.c.l.b16 %v101
    %v136 = vunpack.c.l.b16 %v102
    %v137 = vunpack.c.l.b16 %v103
    %v138 = vunpack.c.l.b16 %v104
    %v139 = vpack.c.b16 %v136, %v135
    %v140 = vpack.c.b16 %v138, %v137
    %vm143 = vcmask 261120
    %v145 = vsel %vm143, %v130, 0
    %147 = vmatprep.subr.bf16.mxu0 0
    %148 = vmatpush1.bf16.msra.mxu0 0
    %149 = vmatprep.subr.bf16.mxu0 0
    %150 = vmatpush1.bf16.msra.mxu0 0
    %151 = vmatprep.subr.bf16.mxu0 0
    %152 = vmatpush1.bf16.msra.mxu0 0
    %153 = vmatprep.subr.bf16.mxu0 0
    %154 = vmatpush1.bf16.msra.mxu0 0
    %155 = vmatprep.subr.bf16.mxu0 0
    %156 = vmatpush1.bf16.msra.mxu0 0
    %157 = vmatprep.subr.bf16.mxu0 0
    %158 = vmatpush1.bf16.msra.mxu0 0
    %159 = vmatprep.subr.bf16.mxu0 0
    %160 = vmatpush1.bf16.msra.mxu0 %v140
    %161 = vmatprep.subr.bf16.mxu0 0
    %162 = vmatpush1.bf16.msra.mxu0 %v139
    %163 = vmatprep.subr.bf16.mxu0 0
    %164 = vmatpush2.bf16.msra.mxu0 0
    %165 = vmatprep.subr.bf16.mxu0 0
    %166 = vmatpush2.bf16.msra.mxu0 0
    %167 = vmatprep.subr.bf16.mxu0 0
    %168 = vmatpush2.bf16.msra.mxu0 0
    %169 = vmatprep.subr.bf16.mxu0 0
    %170 = vmatpush2.bf16.msra.mxu0 0
    %171 = vmatprep.subr.bf16.mxu0 0
    %172 = vmatpush2.bf16.msra.mxu0 0
    %173 = vmatprep.subr.bf16.mxu0 0
    %174 = vmatpush2.bf16.msra.mxu0 0
    %175 = vmatprep.subr.bf16.mxu0 0
    %176 = vmatpush2.bf16.msra.mxu0 0
    %177 = vmatprep.subr.bf16.mxu0 0
    %178 = vmatpush2.bf16.msra.mxu0 0
    %179 = vmatprep.mubr.bf16.mxu0 0
    %180 = vmatmul.mubr.bf16.gmra.mxu0 %v145
    %v181 = vpop.f32.mrf.mxu0
    %v182 = vadd.f32 0.0, %v181
    %v183 = vpop.f32.mrf.mxu0
    %v184 = vpop.f32.mrf.mxu0
    %v185 = vpop.f32.mrf.mxu0
    %186 = vdwg.mxu0
    %v188 = vrot.slane %v182, 4
    %v190 = vadd.f32 %v87, %v188
    %v191 = vmul.f32 %v190, 0.5
    %v192 = vtanh.pop %v191
    %v193 = vmul.f32 %v192, 0.5
    %v194 = vadd.f32 %v193, 0.5
    %v195 = vtanh.pop %v190
    %v197 = vrot.slane %v120, 4
    %v199 = vmul.f32 %v194, %v197
    %201 = vrot.lane.b32.xlu0 %v195, 64
    %v202 = vpop.permute.xlu0 %201
    %v204 = vmul.f32 %v194, %v202
    %206 = vrot.lane.b32.xlu0 %v204, 32
    %v207 = vpop.permute.xlu0 %206
    %v209 = vadd.f32 %v199, %v207
    %v210 = vtanh.pop %v209
    %212 = vrot.lane.b32.xlu0 %v210, 64
    %v213 = vpop.permute.xlu0 %212
    %v215 = vmul.f32 %v194, %v213
    %v216 = vpack.c.bf16 %v215, %v215
    %v218 = vrot.slane %v216, 2
    %219 = vrot.lane.b32.xlu0 %v218, 32
    %v220 = vpop.permute.xlu0 %219
    %v222 = vsel %vm143, %v220, 0
    %224 = vmatprep.subr.bf16.mxu0 0
    %225 = vmatpush1.bf16.msra.mxu0 0
    %226 = vmatprep.subr.bf16.mxu0 0
    %227 = vmatpush1.bf16.msra.mxu0 0
    %228 = vmatprep.subr.bf16.mxu0 0
    %229 = vmatpush1.bf16.msra.mxu0 0
    %230 = vmatprep.subr.bf16.mxu0 0
    %231 = vmatpush1.bf16.msra.mxu0 0
    %232 = vmatprep.subr.bf16.mxu0 0
    %233 = vmatpush1.bf16.msra.mxu0 0
    %234 = vmatprep.subr.bf16.mxu0 0
    %235 = vmatpush1.bf16.msra.mxu0 0
    %236 = vmatprep.subr.bf16.mxu0 0
    %237 = vmatpush1.bf16.msra.mxu0 %v140
    %238 = vmatprep.subr.bf16.mxu0 0
    %239 = vmatpush1.bf16.msra.mxu0 %v139
    %240 = vmatprep.subr.bf16.mxu0 0
    %241 = vmatpush2.bf16.msra.mxu0 0
    %242 = vmatprep.subr.bf16.mxu0 0
    %243 = vmatpush2.bf16.msra.mxu0 0
    %244 = vmatprep.subr.bf16.mxu0 0
    %245 = vmatpush2.bf16.msra.mxu0 0
    %246 = vmatprep.subr.bf16.mxu0 0
    %247 = vmatpush2.bf16.msra.mxu0 0
    %248 = vmatprep.subr.bf16.mxu0 0
    %249 = vmatpush2.bf16.msra.mxu0 0
    %250 = vmatprep.subr.bf16.mxu0 0
    %251 = vmatpush2.bf16.msra.mxu0 0
    %252 = vmatprep.subr.bf16.mxu0 0
    %253 = vmatpush2.bf16.msra.mxu0 0
    %254 = vmatprep.subr.bf16.mxu0 0
    %255 = vmatpush2.bf16.msra.mxu0 0
    %256 = vmatprep.mubr.bf16.mxu0 0
    %257 = vmatmul.mubr.bf16.gmra.mxu0 %v222
    %v258 = vpop.f32.mrf.mxu0
    %v259 = vadd.f32 0.0, %v258
    %v260 = vpop.f32.mrf.mxu0
    %v261 = vpop.f32.mrf.mxu0
    %v262 = vpop.f32.mrf.mxu0
    %263 = vdwg.mxu0
    %v264 = vadd.f32 %v90, %v259
    %v265 = vmul.f32 %v264, 0.5
    %v266 = vtanh.pop %v265
    %v267 = vmul.f32 %v266, 0.5
    %v268 = vadd.f32 %v267, 0.5
    %v269 = vtanh.pop %v264
    %v271 = vrot.slane %v209, 4
    %v273 = vmul.f32 %v268, %v271
    %275 = vrot.lane.b32.xlu0 %v269, 64
    %v276 = vpop.permute.xlu0 %275
    %v278 = vmul.f32 %v268, %v276
    %280 = vrot.lane.b32.xlu0 %v278, 32
    %v281 = vpop.permute.xlu0 %280
    %v283 = vadd.f32 %v273, %v281
    %v284 = vtanh.pop %v283
    %286 = vrot.lane.b32.xlu0 %v284, 64
    %v287 = vpop.permute.xlu0 %286
    %v289 = vmul.f32 %v268, %v287
    %v290 = vpack.c.bf16 %v289, %v289
    %292 = vrot.lane.b32.xlu0 %v290, 32
    %v293 = vpop.permute.xlu0 %292
    %v295 = vsel %vm143, %v293, 0
    %297 = vmatprep.subr.bf16.mxu0 0
    %298 = vmatpush1.bf16.msra.mxu0 0
    %299 = vmatprep.subr.bf16.mxu0 0
    %300 = vmatpush1.bf16.msra.mxu0 0
    %301 = vmatprep.subr.bf16.mxu0 0
    %302 = vmatpush1.bf16.msra.mxu0 0
    %303 = vmatprep.subr.bf16.mxu0 0
    %304 = vmatpush1.bf16.msra.mxu0 0
    %305 = vmatprep.subr.bf16.mxu0 0
    %306 = vmatpush1.bf16.msra.mxu0 0
    %307 = vmatprep.subr.bf16.mxu0 0
    %308 = vmatpush1.bf16.msra.mxu0 0
    %309 = vmatprep.subr.bf16.mxu0 0
    %310 = vmatpush1.bf16.msra.mxu0 %v140
    %311 = vmatprep.subr.bf16.mxu0 0
    %312 = vmatpush1.bf16.msra.mxu0 %v139
    %313 = vmatprep.subr.bf16.mxu0 0
    %314 = vmatpush2.bf16.msra.mxu0 0
    %315 = vmatprep.subr.bf16.mxu0 0
    %316 = vmatpush2.bf16.msra.mxu0 0
    %317 = vmatprep.subr.bf16.mxu0 0
    %318 = vmatpush2.bf16.msra.mxu0 0
    %319 = vmatprep.subr.bf16.mxu0 0
    %320 = vmatpush2.bf16.msra.mxu0 0
    %321 = vmatprep.subr.bf16.mxu0 0
    %322 = vmatpush2.bf16.msra.mxu0 0
    %323 = vmatprep.subr.bf16.mxu0 0
    %324 = vmatpush2.bf16.msra.mxu0 0
    %325 = vmatprep.subr.bf16.mxu0 0
    %326 = vmatpush2.bf16.msra.mxu0 0
    %327 = vmatprep.subr.bf16.mxu0 0
    %328 = vmatpush2.bf16.msra.mxu0 0
    %329 = vmatprep.mubr.bf16.mxu0 0
    %330 = vmatmul.mubr.bf16.gmra.mxu0 %v295
    %v331 = vpop.f32.mrf.mxu0
    %v332 = vadd.f32 0.0, %v331
    %v333 = vpop.f32.mrf.mxu0
    %v334 = vpop.f32.mrf.mxu0
    %v335 = vpop.f32.mrf.mxu0
    %336 = vdwg.mxu0
    %v338 = vrot.slane %v332, 4
    %v340 = vadd.f32 %v90, %v338
    %v341 = vmul.f32 %v340, 0.5
    %v342 = vtanh.pop %v341
    %v343 = vmul.f32 %v342, 0.5
    %v344 = vadd.f32 %v343, 0.5
    %v345 = vtanh.pop %v340
    %v347 = vrot.slane %v283, 4
    %v349 = vmul.f32 %v344, %v347
    %351 = vrot.lane.b32.xlu0 %v345, 64
    %v352 = vpop.permute.xlu0 %351
    %v354 = vmul.f32 %v344, %v352
    %356 = vrot.lane.b32.xlu0 %v354, 32
    %v357 = vpop.permute.xlu0 %356
    %v359 = vadd.f32 %v349, %v357
    %v360 = vtanh.pop %v359
    %362 = vrot.lane.b32.xlu0 %v360, 64
    %v363 = vpop.permute.xlu0 %362
    %v365 = vmul.f32 %v344, %v363
    %v366 = vpack.c.bf16 %v365, %v365
    %v368 = vrot.slane %v366, 2
    %369 = vrot.lane.b32.xlu0 %v368, 32
    %v370 = vpop.permute.xlu0 %369
    %v372 = vsel %vm143, %v370, 0
    %374 = vmatprep.subr.bf16.mxu0 0
    %375 = vmatpush1.bf16.msra.mxu0 0
    %376 = vmatprep.subr.bf16.mxu0 0
    %377 = vmatpush1.bf16.msra.mxu0 0
    %378 = vmatprep.subr.bf16.mxu0 0
    %379 = vmatpush1.bf16.msra.mxu0 0
    %380 = vmatprep.subr.bf16.mxu0 0
    %381 = vmatpush1.bf16.msra.mxu0 0
    %382 = vmatprep.subr.bf16.mxu0 0
    %383 = vmatpush1.bf16.msra.mxu0 0
    %384 = vmatprep.subr.bf16.mxu0 0
    %385 = vmatpush1.bf16.msra.mxu0 0
    %386 = vmatprep.subr.bf16.mxu0 0
    %387 = vmatpush1.bf16.msra.mxu0 %v140
    %388 = vmatprep.subr.bf16.mxu0 0
    %389 = vmatpush1.bf16.msra.mxu0 %v139
    %390 = vmatprep.subr.bf16.mxu0 0
    %391 = vmatpush2.bf16.msra.mxu0 0
    %392 = vmatprep.subr.bf16.mxu0 0
    %393 = vmatpush2.bf16.msra.mxu0 0
    %394 = vmatprep.subr.bf16.mxu0 0
    %395 = vmatpush2.bf16.msra.mxu0 0
    %396 = vmatprep.subr.bf16.mxu0 0
    %397 = vmatpush2.bf16.msra.mxu0 0
    %398 = vmatprep.subr.bf16.mxu0 0
    %399 = vmatpush2.bf16.msra.mxu0 0
    %400 = vmatprep.subr.bf16.mxu0 0
    %401 = vmatpush2.bf16.msra.mxu0 0
    %402 = vmatprep.subr.bf16.mxu0 0
    %403 = vmatpush2.bf16.msra.mxu0 0
    %404 = vmatprep.subr.bf16.mxu0 0
    %405 = vmatpush2.bf16.msra.mxu0 0
    %406 = vmatprep.mubr.bf16.mxu0 0
    %407 = vmatmul.mubr.bf16.gmra.mxu0 %v372
    %v408 = vpop.f32.mrf.mxu0
    %v409 = vadd.f32 0.0, %v408
    %v410 = vpop.f32.mrf.mxu0
    %v411 = vpop.f32.mrf.mxu0
    %v412 = vpop.f32.mrf.mxu0
    %413 = vdwg.mxu0
    %v414 = vadd.f32 %v95, %v409
    %v415 = vmul.f32 %v414, 0.5
    %v416 = vtanh.pop %v415
    %v417 = vmul.f32 %v416, 0.5
    %v418 = vadd.f32 %v417, 0.5
    %v419 = vtanh.pop %v414
    %v421 = vrot.slane %v359, 4
    %v423 = vmul.f32 %v418, %v421
    %425 = vrot.lane.b32.xlu0 %v419, 64
    %v426 = vpop.permute.xlu0 %425
    %v428 = vmul.f32 %v418, %v426
    %430 = vrot.lane.b32.xlu0 %v428, 32
    %v431 = vpop.permute.xlu0 %430
    %v433 = vadd.f32 %v423, %v431
    %v434 = vtanh.pop %v433
    %436 = vrot.lane.b32.xlu0 %v434, 64
    %v437 = vpop.permute.xlu0 %436
    %v439 = vmul.f32 %v418, %v437
    %v440 = vpack.c.bf16 %v439, %v439
    %442 = vrot.lane.b32.xlu0 %v440, 32
    %v443 = vpop.permute.xlu0 %442
    %v445 = vsel %vm143, %v443, 0
    %447 = vmatprep.subr.bf16.mxu0 0
    %448 = vmatpush1.bf16.msra.mxu0 0
    %449 = vmatprep.subr.bf16.mxu0 0
    %450 = vmatpush1.bf16.msra.mxu0 0
    %451 = vmatprep.subr.bf16.mxu0 0
    %452 = vmatpush1.bf16.msra.mxu0 0
    %453 = vmatprep.subr.bf16.mxu0 0
    %454 = vmatpush1.bf16.msra.mxu0 0
    %455 = vmatprep.subr.bf16.mxu0 0
    %456 = vmatpush1.bf16.msra.mxu0 0
    %457 = vmatprep.subr.bf16.mxu0 0
    %458 = vmatpush1.bf16.msra.mxu0 0
    %459 = vmatprep.subr.bf16.mxu0 0
    %460 = vmatpush1.bf16.msra.mxu0 %v140
    %461 = vmatprep.subr.bf16.mxu0 0
    %462 = vmatpush1.bf16.msra.mxu0 %v139
    %463 = vmatprep.subr.bf16.mxu0 0
    %464 = vmatpush2.bf16.msra.mxu0 0
    %465 = vmatprep.subr.bf16.mxu0 0
    %466 = vmatpush2.bf16.msra.mxu0 0
    %467 = vmatprep.subr.bf16.mxu0 0
    %468 = vmatpush2.bf16.msra.mxu0 0
    %469 = vmatprep.subr.bf16.mxu0 0
    %470 = vmatpush2.bf16.msra.mxu0 0
    %471 = vmatprep.subr.bf16.mxu0 0
    %472 = vmatpush2.bf16.msra.mxu0 0
    %473 = vmatprep.subr.bf16.mxu0 0
    %474 = vmatpush2.bf16.msra.mxu0 0
    %475 = vmatprep.subr.bf16.mxu0 0
    %476 = vmatpush2.bf16.msra.mxu0 0
    %477 = vmatprep.subr.bf16.mxu0 0
    %478 = vmatpush2.bf16.msra.mxu0 0
    %479 = vmatprep.mubr.bf16.mxu0 0
    %480 = vmatmul.mubr.bf16.gmra.mxu0 %v445
    %v481 = vpop.f32.mrf.mxu0
    %v482 = vadd.f32 0.0, %v481
    %v483 = vpop.f32.mrf.mxu0
    %v484 = vpop.f32.mrf.mxu0
    %v485 = vpop.f32.mrf.mxu0
    %486 = vdwg.mxu0
    %v488 = vrot.slane %v482, 4
    %v490 = vadd.f32 %v95, %v488
    %v491 = vmul.f32 %v490, 0.5
    %v492 = vtanh.pop %v491
    %v493 = vmul.f32 %v492, 0.5
    %v494 = vadd.f32 %v493, 0.5
    %v495 = vtanh.pop %v490
    %v497 = vrot.slane %v433, 4
    %v499 = vmul.f32 %v494, %v497
    %501 = vrot.lane.b32.xlu0 %v495, 64
    %v502 = vpop.permute.xlu0 %501
    %v504 = vmul.f32 %v494, %v502
    %506 = vrot.lane.b32.xlu0 %v504, 32
    %v507 = vpop.permute.xlu0 %506
    %v509 = vadd.f32 %v499, %v507
    %v510 = vtanh.pop %v509
    %512 = vrot.lane.b32.xlu0 %v510, 64
    %v513 = vpop.permute.xlu0 %512
    %v515 = vmul.f32 %v494, %v513
    %v516 = vpack.c.bf16 %v515, %v515
    %v518 = vrot.slane %v516, 2
    %519 = vrot.lane.b32.xlu0 %v518, 32
    %v520 = vpop.permute.xlu0 %519
    %v522 = vsel %vm143, %v520, 0
    %524 = vmatprep.subr.bf16.mxu0 0
    %525 = vmatpush1.bf16.msra.mxu0 0
    %526 = vmatprep.subr.bf16.mxu0 0
    %527 = vmatpush1.bf16.msra.mxu0 0
    %528 = vmatprep.subr.bf16.mxu0 0
    %529 = vmatpush1.bf16.msra.mxu0 0
    %530 = vmatprep.subr.bf16.mxu0 0
    %531 = vmatpush1.bf16.msra.mxu0 0
    %532 = vmatprep.subr.bf16.mxu0 0
    %533 = vmatpush1.bf16.msra.mxu0 0
    %534 = vmatprep.subr.bf16.mxu0 0
    %535 = vmatpush1.bf16.msra.mxu0 0
    %536 = vmatprep.subr.bf16.mxu0 0
    %537 = vmatpush1.bf16.msra.mxu0 %v140
    %538 = vmatprep.subr.bf16.mxu0 0
    %539 = vmatpush1.bf16.msra.mxu0 %v139
    %540 = vmatprep.subr.bf16.mxu0 0
    %541 = vmatpush2.bf16.msra.mxu0 0
    %542 = vmatprep.subr.bf16.mxu0 0
    %543 = vmatpush2.bf16.msra.mxu0 0
    %544 = vmatprep.subr.bf16.mxu0 0
    %545 = vmatpush2.bf16.msra.mxu0 0
    %546 = vmatprep.subr.bf16.mxu0 0
    %547 = vmatpush2.bf16.msra.mxu0 0
    %548 = vmatprep.subr.bf16.mxu0 0
    %549 = vmatpush2.bf16.msra.mxu0 0
    %550 = vmatprep.subr.bf16.mxu0 0
    %551 = vmatpush2.bf16.msra.mxu0 0
    %552 = vmatprep.subr.bf16.mxu0 0
    %553 = vmatpush2.bf16.msra.mxu0 0
    %554 = vmatprep.subr.bf16.mxu0 0
    %555 = vmatpush2.bf16.msra.mxu0 0
    %556 = vmatprep.mubr.bf16.mxu0 0
    %557 = vmatmul.mubr.bf16.gmra.mxu0 %v522
    %v558 = vpop.f32.mrf.mxu0
    %v559 = vadd.f32 0.0, %v558
    %v560 = vpop.f32.mrf.mxu0
    %v561 = vpop.f32.mrf.mxu0
    %v562 = vpop.f32.mrf.mxu0
    %563 = vdwg.mxu0
    %v564 = vadd.f32 %v98, %v559
    %v565 = vmul.f32 %v564, 0.5
    %v566 = vtanh.pop %v565
    %v567 = vmul.f32 %v566, 0.5
    %v568 = vadd.f32 %v567, 0.5
    %v569 = vtanh.pop %v564
    %v571 = vrot.slane %v509, 4
    %v573 = vmul.f32 %v568, %v571
    %575 = vrot.lane.b32.xlu0 %v569, 64
    %v576 = vpop.permute.xlu0 %575
    %v578 = vmul.f32 %v568, %v576
    %580 = vrot.lane.b32.xlu0 %v578, 32
    %v581 = vpop.permute.xlu0 %580
    %v583 = vadd.f32 %v573, %v581
    %v584 = vtanh.pop %v583
    %586 = vrot.lane.b32.xlu0 %v584, 64
    %v587 = vpop.permute.xlu0 %586
    %v589 = vmul.f32 %v568, %v587
    %v590 = vpack.c.bf16 %v589, %v589
    %592 = vrot.lane.b32.xlu0 %v590, 32
    %v593 = vpop.permute.xlu0 %592
    %v595 = vsel %vm143, %v593, 0
    %597 = vmatprep.subr.bf16.mxu0 0
    %598 = vmatpush1.bf16.msra.mxu0 0
    %599 = vmatprep.subr.bf16.mxu0 0
    %600 = vmatpush1.bf16.msra.mxu0 0
    %601 = vmatprep.subr.bf16.mxu0 0
    %602 = vmatpush1.bf16.msra.mxu0 0
    %603 = vmatprep.subr.bf16.mxu0 0
    %604 = vmatpush1.bf16.msra.mxu0 0
    %605 = vmatprep.subr.bf16.mxu0 0
    %606 = vmatpush1.bf16.msra.mxu0 0
    %607 = vmatprep.subr.bf16.mxu0 0
    %608 = vmatpush1.bf16.msra.mxu0 0
    %609 = vmatprep.subr.bf16.mxu0 0
    %610 = vmatpush1.bf16.msra.mxu0 %v140
    %611 = vmatprep.subr.bf16.mxu0 0
    %612 = vmatpush1.bf16.msra.mxu0 %v139
    %613 = vmatprep.subr.bf16.mxu0 0
    %614 = vmatpush2.bf16.msra.mxu0 0
    %615 = vmatprep.subr.bf16.mxu0 0
    %616 = vmatpush2.bf16.msra.mxu0 0
    %617 = vmatprep.subr.bf16.mxu0 0
    %618 = vmatpush2.bf16.msra.mxu0 0
    %619 = vmatprep.subr.bf16.mxu0 0
    %620 = vmatpush2.bf16.msra.mxu0 0
    %621 = vmatprep.subr.bf16.mxu0 0
    %622 = vmatpush2.bf16.msra.mxu0 0
    %623 = vmatprep.subr.bf16.mxu0 0
    %624 = vmatpush2.bf16.msra.mxu0 0
    %625 = vmatprep.subr.bf16.mxu0 0
    %626 = vmatpush2.bf16.msra.mxu0 0
    %627 = vmatprep.subr.bf16.mxu0 0
    %628 = vmatpush2.bf16.msra.mxu0 0
    %629 = vmatprep.mubr.bf16.mxu0 0
    %630 = vmatmul.mubr.bf16.gmra.mxu0 %v595
    %v631 = vpop.f32.mrf.mxu0
    %v632 = vadd.f32 0.0, %v631
    %v633 = vpop.f32.mrf.mxu0
    %v634 = vpop.f32.mrf.mxu0
    %v635 = vpop.f32.mrf.mxu0
    %636 = vdwg.mxu0
    %v638 = vrot.slane %v632, 4
    %v640 = vadd.f32 %v98, %v638
    %v641 = vmul.f32 %v640, 0.5
    %v642 = vtanh.pop %v641
    %v643 = vmul.f32 %v642, 0.5
    %v644 = vadd.f32 %v643, 0.5
    %v645 = vtanh.pop %v640
    %v647 = vrot.slane %v583, 4
    %v649 = vmul.f32 %v644, %v647
    %651 = vrot.lane.b32.xlu0 %v645, 64
    %v652 = vpop.permute.xlu0 %651
    %v654 = vmul.f32 %v644, %v652
    %656 = vrot.lane.b32.xlu0 %v654, 32
    %v657 = vpop.permute.xlu0 %656
    %v659 = vadd.f32 %v649, %v657
    %v660 = vtanh.pop %v659
    %662 = vrot.lane.b32.xlu0 %v660, 64
    %v663 = vpop.permute.xlu0 %662
    %v665 = vmul.f32 %v644, %v663
    %v666 = vsel %vm48, %v126, %v215
    %v667 = vsel %vm48, %v289, %v365
    %v668 = vsel %vm48, %v439, %v515
    %v669 = vsel %vm48, %v589, %v665
    %v670 = vpack.c.bf16 %v667, %v666
    %v671 = vpack.c.bf16 %v669, %v668
    %v672 = vld [vmem:[%s1 + $0x14] sm:$0xf]
    %v673 = vld [vmem:[%s1 + $0x18] sm:$0xf]
    %v674 = vld [vmem:[%s1 + $0x1c] sm:$0xf]
    %v675 = vld [vmem:[%s1 + $0x20] sm:$0xf]
    %v676 = vld [vmem:[#allocation2 + $0x8] sm:$0x1]
    %v677 = vlaneseq
    %v678 = vshrl.u32 %v677, 7
    %v679 = vsub.s32 0, %v678
    %v680 = vrot.slane %v676, %v679
    %683 = vrot.lane.b32.xlu0 %v670, 32
    %v684 = vpop.permute.xlu0 %683
    %685 = vrot.lane.b32.xlu0 %v671, 32
    %v686 = vpop.permute.xlu0 %685
    %v691 = vunpack.c.l.b16 %v672
    %v692 = vunpack.c.l.b16 %v673
    %v693 = vunpack.c.l.b16 %v674
    %v694 = vunpack.c.l.b16 %v675
    %v695 = vpack.c.b16 %v692, %v691
    %v696 = vpack.c.b16 %v694, %v693
    %v700 = vsel %vm143, %v684, 0
    %v703 = vsel %vm143, %v686, 0
    %705 = vmatprep.subr.bf16.mxu0 0
    %706 = vmatpush1.bf16.msra.mxu0 0
    %707 = vmatprep.subr.bf16.mxu0 0
    %708 = vmatpush1.bf16.msra.mxu0 0
    %709 = vmatprep.subr.bf16.mxu0 0
    %710 = vmatpush1.bf16.msra.mxu0 0
    %711 = vmatprep.subr.bf16.mxu0 0
    %712 = vmatpush1.bf16.msra.mxu0 0
    %713 = vmatprep.subr.bf16.mxu0 0
    %714 = vmatpush1.bf16.msra.mxu0 0
    %715 = vmatprep.subr.bf16.mxu0 0
    %716 = vmatpush1.bf16.msra.mxu0 0
    %717 = vmatprep.subr.bf16.mxu0 0
    %718 = vmatpush1.bf16.msra.mxu0 %v696
    %719 = vmatprep.subr.bf16.mxu0 0
    %720 = vmatpush1.bf16.msra.mxu0 %v695
    %721 = vmatprep.subr.bf16.mxu0 0
    %722 = vmatpush2.bf16.msra.mxu0 0
    %723 = vmatprep.subr.bf16.mxu0 0
    %724 = vmatpush2.bf16.msra.mxu0 0
    %725 = vmatprep.subr.bf16.mxu0 0
    %726 = vmatpush2.bf16.msra.mxu0 0
    %727 = vmatprep.subr.bf16.mxu0 0
    %728 = vmatpush2.bf16.msra.mxu0 0
    %729 = vmatprep.subr.bf16.mxu0 0
    %730 = vmatpush2.bf16.msra.mxu0 0
    %731 = vmatprep.subr.bf16.mxu0 0
    %732 = vmatpush2.bf16.msra.mxu0 0
    %733 = vmatprep.subr.bf16.mxu0 0
    %734 = vmatpush2.bf16.msra.mxu0 0
    %735 = vmatprep.subr.bf16.mxu0 0
    %736 = vmatpush2.bf16.msra.mxu0 0
    %737 = vmatprep.mubr.bf16.mxu0 0
    %738 = vmatmul.mubr.bf16.gmra.mxu0 %v700
    %v739 = vpop.f32.mrf.mxu0
    %v740 = vadd.f32 %v680, %v739
    %v741 = vpop.f32.mrf.mxu0
    %v742 = vpop.f32.mrf.mxu0
    %v743 = vadd.f32 %v680, %v742
    %v744 = vpop.f32.mrf.mxu0
    %745 = vmatprep.mubr.bf16.mxu0 0
    %746 = vmatmul.mubr.bf16.gmra.mxu0 %v703
    %v747 = vpop.f32.mrf.mxu0
    %v748 = vadd.f32 %v680, %v747
    %v749 = vpop.f32.mrf.mxu0
    %v750 = vpop.f32.mrf.mxu0
    %v751 = vadd.f32 %v680, %v750
    %v752 = vpop.f32.mrf.mxu0
    %753 = vdwg.mxu0
    %v754 = vld [vmem:[%s1 + $0x24] sm:$0xf]
    %v755 = vld [vmem:[%s1 + $0x28] sm:$0xf]
    %v756 = vld [vmem:[%s1 + $0x2c] sm:$0xf]
    %v757 = vld [vmem:[%s1 + $0x30] sm:$0xf]
    %v758 = vmul.f32 %v740, 0.5
    %v759 = vtanh.pop %v758
    %v760 = vmul.f32 %v759, 0.5
    %v761 = vadd.f32 %v760, 0.5
    %v762 = vtanh.pop %v740
    %v763 = vmul.f32 %v761, 0.0
    %765 = vrot.lane.b32.xlu0 %v762, 64
    %v766 = vpop.permute.xlu0 %765
    %v768 = vmul.f32 %v761, %v766
    %770 = vrot.lane.b32.xlu0 %v768, 32
    %v771 = vpop.permute.xlu0 %770
    %v773 = vadd.f32 %v763, %v771
    %v774 = vtanh.pop %v773
    %776 = vrot.lane.b32.xlu0 %v774, 64
    %v777 = vpop.permute.xlu0 %776
    %v779 = vmul.f32 %v761, %v777
    %v780 = vpack.c.bf16 %v779, %v779
    %782 = vrot.lane.b32.xlu0 %v780, 32
    %v783 = vpop.permute.xlu0 %782
    %v788 = vunpack.c.l.b16 %v754
    %v789 = vunpack.c.l.b16 %v755
    %v790 = vunpack.c.l.b16 %v756
    %v791 = vunpack.c.l.b16 %v757
    %v792 = vpack.c.b16 %v789, %v788
    %v793 = vpack.c.b16 %v791, %v790
    %v797 = vsel %vm143, %v783, 0
    %799 = vmatprep.subr.bf16.mxu0 0
    %800 = vmatpush1.bf16.msra.mxu0 0
    %801 = vmatprep.subr.bf16.mxu0 0
    %802 = vmatpush1.bf16.msra.mxu0 0
    %803 = vmatprep.subr.bf16.mxu0 0
    %804 = vmatpush1.bf16.msra.mxu0 0
    %805 = vmatprep.subr.bf16.mxu0 0
    %806 = vmatpush1.bf16.msra.mxu0 0
    %807 = vmatprep.subr.bf16.mxu0 0
    %808 = vmatpush1.bf16.msra.mxu0 0
    %809 = vmatprep.subr.bf16.mxu0 0
    %810 = vmatpush1.bf16.msra.mxu0 0
    %811 = vmatprep.subr.bf16.mxu0 0
    %812 = vmatpush1.bf16.msra.mxu0 %v793
    %813 = vmatprep.subr.bf16.mxu0 0
    %814 = vmatpush1.bf16.msra.mxu0 %v792
    %815 = vmatprep.subr.bf16.mxu0 0
    %816 = vmatpush2.bf16.msra.mxu0 0
    %817 = vmatprep.subr.bf16.mxu0 0
    %818 = vmatpush2.bf16.msra.mxu0 0
    %819 = vmatprep.subr.bf16.mxu0 0
    %820 = vmatpush2.bf16.msra.mxu0 0
    %821 = vmatprep.subr.bf16.mxu0 0
    %822 = vmatpush2.bf16.msra.mxu0 0
    %823 = vmatprep.subr.bf16.mxu0 0
    %824 = vmatpush2.bf16.msra.mxu0 0
    %825 = vmatprep.subr.bf16.mxu0 0
    %826 = vmatpush2.bf16.msra.mxu0 0
    %827 = vmatprep.subr.bf16.mxu0 0
    %828 = vmatpush2.bf16.msra.mxu0 0
    %829 = vmatprep.subr.bf16.mxu0 0
    %830 = vmatpush2.bf16.msra.mxu0 0
    %831 = vmatprep.mubr.bf16.mxu0 0
    %832 = vmatmul.mubr.bf16.gmra.mxu0 %v797
    %v833 = vpop.f32.mrf.mxu0
    %v834 = vadd.f32 0.0, %v833
    %v835 = vpop.f32.mrf.mxu0
    %v836 = vpop.f32.mrf.mxu0
    %v837 = vpop.f32.mrf.mxu0
    %838 = vdwg.mxu0
    %v840 = vrot.slane %v834, 4
    %v842 = vadd.f32 %v740, %v840
    %v843 = vmul.f32 %v842, 0.5
    %v844 = vtanh.pop %v843
    %v845 = vmul.f32 %v844, 0.5
    %v846 = vadd.f32 %v845, 0.5
    %v847 = vtanh.pop %v842
    %v849 = vrot.slane %v773, 4
    %v851 = vmul.f32 %v846, %v849
    %853 = vrot.lane.b32.xlu0 %v847, 64
    %v854 = vpop.permute.xlu0 %853
    %v856 = vmul.f32 %v846, %v854
    %858 = vrot.lane.b32.xlu0 %v856, 32
    %v859 = vpop.permute.xlu0 %858
    %v861 = vadd.f32 %v851, %v859
    %v862 = vtanh.pop %v861
    %864 = vrot.lane.b32.xlu0 %v862, 64
    %v865 = vpop.permute.xlu0 %864
    %v867 = vmul.f32 %v846, %v865
    %v868 = vpack.c.bf16 %v867, %v867
    %v870 = vrot.slane %v868, 2
    %871 = vrot.lane.b32.xlu0 %v870, 32
    %v872 = vpop.permute.xlu0 %871
    %v874 = vsel %vm143, %v872, 0
    %876 = vmatprep.subr.bf16.mxu0 0
    %877 = vmatpush1.bf16.msra.mxu0 0
    %878 = vmatprep.subr.bf16.mxu0 0
    %879 = vmatpush1.bf16.msra.mxu0 0
    %880 = vmatprep.subr.bf16.mxu0 0
    %881 = vmatpush1.bf16.msra.mxu0 0
    %882 = vmatprep.subr.bf16.mxu0 0
    %883 = vmatpush1.bf16.msra.mxu0 0
    %884 = vmatprep.subr.bf16.mxu0 0
    %885 = vmatpush1.bf16.msra.mxu0 0
    %886 = vmatprep.subr.bf16.mxu0 0
    %887 = vmatpush1.bf16.msra.mxu0 0
    %888 = vmatprep.subr.bf16.mxu0 0
    %889 = vmatpush1.bf16.msra.mxu0 %v793
    %890 = vmatprep.subr.bf16.mxu0 0
    %891 = vmatpush1.bf16.msra.mxu0 %v792
    %892 = vmatprep.subr.bf16.mxu0 0
    %893 = vmatpush2.bf16.msra.mxu0 0
    %894 = vmatprep.subr.bf16.mxu0 0
    %895 = vmatpush2.bf16.msra.mxu0 0
    %896 = vmatprep.subr.bf16.mxu0 0
    %897 = vmatpush2.bf16.msra.mxu0 0
    %898 = vmatprep.subr.bf16.mxu0 0
    %899 = vmatpush2.bf16.msra.mxu0 0
    %900 = vmatprep.subr.bf16.mxu0 0
    %901 = vmatpush2.bf16.msra.mxu0 0
    %902 = vmatprep.subr.bf16.mxu0 0
    %903 = vmatpush2.bf16.msra.mxu0 0
    %904 = vmatprep.subr.bf16.mxu0 0
    %905 = vmatpush2.bf16.msra.mxu0 0
    %906 = vmatprep.subr.bf16.mxu0 0
    %907 = vmatpush2.bf16.msra.mxu0 0
    %908 = vmatprep.mubr.bf16.mxu0 0
    %909 = vmatmul.mubr.bf16.gmra.mxu0 %v874
    %v910 = vpop.f32.mrf.mxu0
    %v911 = vadd.f32 0.0, %v910
    %v912 = vpop.f32.mrf.mxu0
    %v913 = vpop.f32.mrf.mxu0
    %v914 = vpop.f32.mrf.mxu0
    %915 = vdwg.mxu0
    %v916 = vadd.f32 %v743, %v911
    %v917 = vmul.f32 %v916, 0.5
    %v918 = vtanh.pop %v917
    %v919 = vmul.f32 %v918, 0.5
    %v920 = vadd.f32 %v919, 0.5
    %v921 = vtanh.pop %v916
    %v923 = vrot.slane %v861, 4
    %v925 = vmul.f32 %v920, %v923
    %927 = vrot.lane.b32.xlu0 %v921, 64
    %v928 = vpop.permute.xlu0 %927
    %v930 = vmul.f32 %v920, %v928
    %932 = vrot.lane.b32.xlu0 %v930, 32
    %v933 = vpop.permute.xlu0 %932
    %v935 = vadd.f32 %v925, %v933
    %v936 = vtanh.pop %v935
    %938 = vrot.lane.b32.xlu0 %v936, 64
    %v939 = vpop.permute.xlu0 %938
    %v941 = vmul.f32 %v920, %v939
    %v942 = vpack.c.bf16 %v941, %v941
    %944 = vrot.lane.b32.xlu0 %v942, 32
    %v945 = vpop.permute.xlu0 %944
    %v947 = vsel %vm143, %v945, 0
    %949 = vmatprep.subr.bf16.mxu0 0
    %950 = vmatpush1.bf16.msra.mxu0 0
    %951 = vmatprep.subr.bf16.mxu0 0
    %952 = vmatpush1.bf16.msra.mxu0 0
    %953 = vmatprep.subr.bf16.mxu0 0
    %954 = vmatpush1.bf16.msra.mxu0 0
    %955 = vmatprep.subr.bf16.mxu0 0
    %956 = vmatpush1.bf16.msra.mxu0 0
    %957 = vmatprep.subr.bf16.mxu0 0
    %958 = vmatpush1.bf16.msra.mxu0 0
    %959 = vmatprep.subr.bf16.mxu0 0
    %960 = vmatpush1.bf16.msra.mxu0 0
    %961 = vmatprep.subr.bf16.mxu0 0
    %962 = vmatpush1.bf16.msra.mxu0 %v793
    %963 = vmatprep.subr.bf16.mxu0 0
    %964 = vmatpush1.bf16.msra.mxu0 %v792
    %965 = vmatprep.subr.bf16.mxu0 0
    %966 = vmatpush2.bf16.msra.mxu0 0
    %967 = vmatprep.subr.bf16.mxu0 0
    %968 = vmatpush2.bf16.msra.mxu0 0
    %969 = vmatprep.subr.bf16.mxu0 0
    %970 = vmatpush2.bf16.msra.mxu0 0
    %971 = vmatprep.subr.bf16.mxu0 0
    %972 = vmatpush2.bf16.msra.mxu0 0
    %973 = vmatprep.subr.bf16.mxu0 0
    %974 = vmatpush2.bf16.msra.mxu0 0
    %975 = vmatprep.subr.bf16.mxu0 0
    %976 = vmatpush2.bf16.msra.mxu0 0
    %977 = vmatprep.subr.bf16.mxu0 0
    %978 = vmatpush2.bf16.msra.mxu0 0
    %979 = vmatprep.subr.bf16.mxu0 0
    %980 = vmatpush2.bf16.msra.mxu0 0
    %981 = vmatprep.mubr.bf16.mxu0 0
    %982 = vmatmul.mubr.bf16.gmra.mxu0 %v947
    %v983 = vpop.f32.mrf.mxu0
    %v984 = vadd.f32 0.0, %v983
    %v985 = vpop.f32.mrf.mxu0
    %v986 = vpop.f32.mrf.mxu0
    %v987 = vpop.f32.mrf.mxu0
    %988 = vdwg.mxu0
    %v990 = vrot.slane %v984, 4
    %v992 = vadd.f32 %v743, %v990
    %v993 = vmul.f32 %v992, 0.5
    %v994 = vtanh.pop %v993
    %v995 = vmul.f32 %v994, 0.5
    %v996 = vadd.f32 %v995, 0.5
    %v997 = vtanh.pop %v992
    %v999 = vrot.slane %v935, 4
    %v1001 = vmul.f32 %v996, %v999
    %1003 = vrot.lane.b32.xlu0 %v997, 64
    %v1004 = vpop.permute.xlu0 %1003
    %v1006 = vmul.f32 %v996, %v1004
    %1008 = vrot.lane.b32.xlu0 %v1006, 32
    %v1009 = vpop.permute.xlu0 %1008
    %v1011 = vadd.f32 %v1001, %v1009
    %v1012 = vtanh.pop %v1011
    %1014 = vrot.lane.b32.xlu0 %v1012, 64
    %v1015 = vpop.permute.xlu0 %1014
    %v1017 = vmul.f32 %v996, %v1015
    %v1018 = vpack.c.bf16 %v1017, %v1017
    %v1020 = vrot.slane %v1018, 2
    %1021 = vrot.lane.b32.xlu0 %v1020, 32
    %v1022 = vpop.permute.xlu0 %1021
    %v1024 = vsel %vm143, %v1022, 0
    %1026 = vmatprep.subr.bf16.mxu0 0
    %1027 = vmatpush1.bf16.msra.mxu0 0
    %1028 = vmatprep.subr.bf16.mxu0 0
    %1029 = vmatpush1.bf16.msra.mxu0 0
    %1030 = vmatprep.subr.bf16.mxu0 0
    %1031 = vmatpush1.bf16.msra.mxu0 0
    %1032 = vmatprep.subr.bf16.mxu0 0
    %1033 = vmatpush1.bf16.msra.mxu0 0
    %1034 = vmatprep.subr.bf16.mxu0 0
    %1035 = vmatpush1.bf16.msra.mxu0 0
    %1036 = vmatprep.subr.bf16.mxu0 0
    %1037 = vmatpush1.bf16.msra.mxu0 0
    %1038 = vmatprep.subr.bf16.mxu0 0
    %1039 = vmatpush1.bf16.msra.mxu0 %v793
    %1040 = vmatprep.subr.bf16.mxu0 0
    %1041 = vmatpush1.bf16.msra.mxu0 %v792
    %1042 = vmatprep.subr.bf16.mxu0 0
    %1043 = vmatpush2.bf16.msra.mxu0 0
    %1044 = vmatprep.subr.bf16.mxu0 0
    %1045 = vmatpush2.bf16.msra.mxu0 0
    %1046 = vmatprep.subr.bf16.mxu0 0
    %1047 = vmatpush2.bf16.msra.mxu0 0
    %1048 = vmatprep.subr.bf16.mxu0 0
    %1049 = vmatpush2.bf16.msra.mxu0 0
    %1050 = vmatprep.subr.bf16.mxu0 0
    %1051 = vmatpush2.bf16.msra.mxu0 0
    %1052 = vmatprep.subr.bf16.mxu0 0
    %1053 = vmatpush2.bf16.msra.mxu0 0
    %1054 = vmatprep.subr.bf16.mxu0 0
    %1055 = vmatpush2.bf16.msra.mxu0 0
    %1056 = vmatprep.subr.bf16.mxu0 0
    %1057 = vmatpush2.bf16.msra.mxu0 0
    %1058 = vmatprep.mubr.bf16.mxu0 0
    %1059 = vmatmul.mubr.bf16.gmra.mxu0 %v1024
    %v1060 = vpop.f32.mrf.mxu0
    %v1061 = vadd.f32 0.0, %v1060
    %v1062 = vpop.f32.mrf.mxu0
    %v1063 = vpop.f32.mrf.mxu0
    %v1064 = vpop.f32.mrf.mxu0
    %1065 = vdwg.mxu0
    %v1066 = vadd.f32 %v748, %v1061
    %v1067 = vmul.f32 %v1066, 0.5
    %v1068 = vtanh.pop %v1067
    %v1069 = vmul.f32 %v1068, 0.5
    %v1070 = vadd.f32 %v1069, 0.5
    %v1071 = vtanh.pop %v1066
    %v1073 = vrot.slane %v1011, 4
    %v1075 = vmul.f32 %v1070, %v1073
    %1077 = vrot.lane.b32.xlu0 %v1071, 64
    %v1078 = vpop.permute.xlu0 %1077
    %v1080 = vmul.f32 %v1070, %v1078
    %1082 = vrot.lane.b32.xlu0 %v1080, 32
    %v1083 = vpop.permute.xlu0 %1082
    %v1085 = vadd.f32 %v1075, %v1083
    %v1086 = vtanh.pop %v1085
    %1088 = vrot.lane.b32.xlu0 %v1086, 64
    %v1089 = vpop.permute.xlu0 %1088
    %v1091 = vmul.f32 %v1070, %v1089
    %v1092 = vpack.c.bf16 %v1091, %v1091
    %1094 = vrot.lane.b32.xlu0 %v1092, 32
    %v1095 = vpop.permute.xlu0 %1094
    %v1097 = vsel %vm143, %v1095, 0
    %1099 = vmatprep.subr.bf16.mxu0 0
    %1100 = vmatpush1.bf16.msra.mxu0 0
    %1101 = vmatprep.subr.bf16.mxu0 0
    %1102 = vmatpush1.bf16.msra.mxu0 0
    %1103 = vmatprep.subr.bf16.mxu0 0
    %1104 = vmatpush1.bf16.msra.mxu0 0
    %1105 = vmatprep.subr.bf16.mxu0 0
    %1106 = vmatpush1.bf16.msra.mxu0 0
    %1107 = vmatprep.subr.bf16.mxu0 0
    %1108 = vmatpush1.bf16.msra.mxu0 0
    %1109 = vmatprep.subr.bf16.mxu0 0
    %1110 = vmatpush1.bf16.msra.mxu0 0
    %1111 = vmatprep.subr.bf16.mxu0 0
    %1112 = vmatpush1.bf16.msra.mxu0 %v793
    %1113 = vmatprep.subr.bf16.mxu0 0
    %1114 = vmatpush1.bf16.msra.mxu0 %v792
    %1115 = vmatprep.subr.bf16.mxu0 0
    %1116 = vmatpush2.bf16.msra.mxu0 0
    %1117 = vmatprep.subr.bf16.mxu0 0
    %1118 = vmatpush2.bf16.msra.mxu0 0
    %1119 = vmatprep.subr.bf16.mxu0 0
    %1120 = vmatpush2.bf16.msra.mxu0 0
    %1121 = vmatprep.subr.bf16.mxu0 0
    %1122 = vmatpush2.bf16.msra.mxu0 0
    %1123 = vmatprep.subr.bf16.mxu0 0
    %1124 = vmatpush2.bf16.msra.mxu0 0
    %1125 = vmatprep.subr.bf16.mxu0 0
    %1126 = vmatpush2.bf16.msra.mxu0 0
    %1127 = vmatprep.subr.bf16.mxu0 0
    %1128 = vmatpush2.bf16.msra.mxu0 0
    %1129 = vmatprep.subr.bf16.mxu0 0
    %1130 = vmatpush2.bf16.msra.mxu0 0
    %1131 = vmatprep.mubr.bf16.mxu0 0
    %1132 = vmatmul.mubr.bf16.gmra.mxu0 %v1097
    %v1133 = vpop.f32.mrf.mxu0
    %v1134 = vadd.f32 0.0, %v1133
    %v1135 = vpop.f32.mrf.mxu0
    %v1136 = vpop.f32.mrf.mxu0
    %v1137 = vpop.f32.mrf.mxu0
    %1138 = vdwg.mxu0
    %v1140 = vrot.slane %v1134, 4
    %v1142 = vadd.f32 %v748, %v1140
    %v1143 = vmul.f32 %v1142, 0.5
    %v1144 = vtanh.pop %v1143
    %v1145 = vmul.f32 %v1144, 0.5
    %v1146 = vadd.f32 %v1145, 0.5
    %v1147 = vtanh.pop %v1142
    %v1149 = vrot.slane %v1085, 4
    %v1151 = vmul.f32 %v1146, %v1149
    %1153 = vrot.lane.b32.xlu0 %v1147, 64
    %v1154 = vpop.permute.xlu0 %1153
    %v1156 = vmul.f32 %v1146, %v1154
    %1158 = vrot.lane.b32.xlu0 %v1156, 32
    %v1159 = vpop.permute.xlu0 %1158
    %v1161 = vadd.f32 %v1151, %v1159
    %v1162 = vtanh.pop %v1161
    %1164 = vrot.lane.b32.xlu0 %v1162, 64
    %v1165 = vpop.permute.xlu0 %1164
    %v1167 = vmul.f32 %v1146, %v1165
    %v1168 = vpack.c.bf16 %v1167, %v1167
    %v1170 = vrot.slane %v1168, 2
    %1171 = vrot.lane.b32.xlu0 %v1170, 32
    %v1172 = vpop.permute.xlu0 %1171
    %v1174 = vsel %vm143, %v1172, 0
    %1176 = vmatprep.subr.bf16.mxu0 0
    %1177 = vmatpush1.bf16.msra.mxu0 0
    %1178 = vmatprep.subr.bf16.mxu0 0
    %1179 = vmatpush1.bf16.msra.mxu0 0
    %1180 = vmatprep.subr.bf16.mxu0 0
    %1181 = vmatpush1.bf16.msra.mxu0 0
    %1182 = vmatprep.subr.bf16.mxu0 0
    %1183 = vmatpush1.bf16.msra.mxu0 0
    %1184 = vmatprep.subr.bf16.mxu0 0
    %1185 = vmatpush1.bf16.msra.mxu0 0
    %1186 = vmatprep.subr.bf16.mxu0 0
    %1187 = vmatpush1.bf16.msra.mxu0 0
    %1188 = vmatprep.subr.bf16.mxu0 0
    %1189 = vmatpush1.bf16.msra.mxu0 %v793
    %1190 = vmatprep.subr.bf16.mxu0 0
    %1191 = vmatpush1.bf16.msra.mxu0 %v792
    %1192 = vmatprep.subr.bf16.mxu0 0
    %1193 = vmatpush2.bf16.msra.mxu0 0
    %1194 = vmatprep.subr.bf16.mxu0 0
    %1195 = vmatpush2.bf16.msra.mxu0 0
    %1196 = vmatprep.subr.bf16.mxu0 0
    %1197 = vmatpush2.bf16.msra.mxu0 0
    %1198 = vmatprep.subr.bf16.mxu0 0
    %1199 = vmatpush2.bf16.msra.mxu0 0
    %1200 = vmatprep.subr.bf16.mxu0 0
    %1201 = vmatpush2.bf16.msra.mxu0 0
    %1202 = vmatprep.subr.bf16.mxu0 0
    %1203 = vmatpush2.bf16.msra.mxu0 0
    %1204 = vmatprep.subr.bf16.mxu0 0
    %1205 = vmatpush2.bf16.msra.mxu0 0
    %1206 = vmatprep.subr.bf16.mxu0 0
    %1207 = vmatpush2.bf16.msra.mxu0 0
    %1208 = vmatprep.mubr.bf16.mxu0 0
    %1209 = vmatmul.mubr.bf16.gmra.mxu0 %v1174
    %v1210 = vpop.f32.mrf.mxu0
    %v1211 = vadd.f32 0.0, %v1210
    %v1212 = vpop.f32.mrf.mxu0
    %v1213 = vpop.f32.mrf.mxu0
    %v1214 = vpop.f32.mrf.mxu0
    %1215 = vdwg.mxu0
    %v1216 = vadd.f32 %v751, %v1211
    %v1217 = vmul.f32 %v1216, 0.5
    %v1218 = vtanh.pop %v1217
    %v1219 = vmul.f32 %v1218, 0.5
    %v1220 = vadd.f32 %v1219, 0.5
    %v1221 = vtanh.pop %v1216
    %v1223 = vrot.slane %v1161, 4
    %v1225 = vmul.f32 %v1220, %v1223
    %1227 = vrot.lane.b32.xlu0 %v1221, 64
    %v1228 = vpop.permute.xlu0 %1227
    %v1230 = vmul.f32 %v1220, %v1228
    %1232 = vrot.lane.b32.xlu0 %v1230, 32
    %v1233 = vpop.permute.xlu0 %1232
    %v1235 = vadd.f32 %v1225, %v1233
    %v1236 = vtanh.pop %v1235
    %1238 = vrot.lane.b32.xlu0 %v1236, 64
    %v1239 = vpop.permute.xlu0 %1238
    %v1241 = vmul.f32 %v1220, %v1239
    %v1242 = vpack.c.bf16 %v1241, %v1241
    %1244 = vrot.lane.b32.xlu0 %v1242, 32
    %v1245 = vpop.permute.xlu0 %1244
    %v1247 = vsel %vm143, %v1245, 0
    %1249 = vmatprep.subr.bf16.mxu0 0
    %1250 = vmatpush1.bf16.msra.mxu0 0
    %1251 = vmatprep.subr.bf16.mxu0 0
    %1252 = vmatpush1.bf16.msra.mxu0 0
    %1253 = vmatprep.subr.bf16.mxu0 0
    %1254 = vmatpush1.bf16.msra.mxu0 0
    %1255 = vmatprep.subr.bf16.mxu0 0
    %1256 = vmatpush1.bf16.msra.mxu0 0
    %1257 = vmatprep.subr.bf16.mxu0 0
    %1258 = vmatpush1.bf16.msra.mxu0 0
    %1259 = vmatprep.subr.bf16.mxu0 0
    %1260 = vmatpush1.bf16.msra.mxu0 0
    %1261 = vmatprep.subr.bf16.mxu0 0
    %1262 = vmatpush1.bf16.msra.mxu0 %v793
    %1263 = vmatprep.subr.bf16.mxu0 0
    %1264 = vmatpush1.bf16.msra.mxu0 %v792
    %1265 = vmatprep.subr.bf16.mxu0 0
    %1266 = vmatpush2.bf16.msra.mxu0 0
    %1267 = vmatprep.subr.bf16.mxu0 0
    %1268 = vmatpush2.bf16.msra.mxu0 0
    %1269 = vmatprep.subr.bf16.mxu0 0
    %1270 = vmatpush2.bf16.msra.mxu0 0
    %1271 = vmatprep.subr.bf16.mxu0 0
    %1272 = vmatpush2.bf16.msra.mxu0 0
    %1273 = vmatprep.subr.bf16.mxu0 0
    %1274 = vmatpush2.bf16.msra.mxu0 0
    %1275 = vmatprep.subr.bf16.mxu0 0
    %1276 = vmatpush2.bf16.msra.mxu0 0
    %1277 = vmatprep.subr.bf16.mxu0 0
    %1278 = vmatpush2.bf16.msra.mxu0 0
    %1279 = vmatprep.subr.bf16.mxu0 0
    %1280 = vmatpush2.bf16.msra.mxu0 0
    %1281 = vmatprep.mubr.bf16.mxu0 0
    %1282 = vmatmul.mubr.bf16.gmra.mxu0 %v1247
    %v1283 = vpop.f32.mrf.mxu0
    %v1284 = vadd.f32 0.0, %v1283
    %v1285 = vpop.f32.mrf.mxu0
    %v1286 = vpop.f32.mrf.mxu0
    %v1287 = vpop.f32.mrf.mxu0
    %1288 = vdwg.mxu0
    %v1290 = vrot.slane %v1284, 4
    %v1292 = vadd.f32 %v751, %v1290
    %v1293 = vmul.f32 %v1292, 0.5
    %v1294 = vtanh.pop %v1293
    %v1295 = vmul.f32 %v1294, 0.5
    %v1296 = vadd.f32 %v1295, 0.5
    %v1297 = vtanh.pop %v1292
    %v1299 = vrot.slane %v1235, 4
    %v1301 = vmul.f32 %v1296, %v1299
    %1303 = vrot.lane.b32.xlu0 %v1297, 64
    %v1304 = vpop.permute.xlu0 %1303
    %v1306 = vmul.f32 %v1296, %v1304
    %1308 = vrot.lane.b32.xlu0 %v1306, 32
    %v1309 = vpop.permute.xlu0 %1308
    %v1311 = vadd.f32 %v1301, %v1309
    %v1312 = vtanh.pop %v1311
    %1314 = vrot.lane.b32.xlu0 %v1312, 64
    %v1315 = vpop.permute.xlu0 %1314
    %v1317 = vmul.f32 %v1296, %v1315
    %v1318 = vpack.c.bf16 %v1317, %v1317
    %v1319 = vld [vmem:[%s1 + $0x34] sm:$0xf]
    %v1320 = vld [vmem:[%s1 + $0x38] sm:$0xf]
    %v1321 = vld [vmem:[%s1 + $0x3c] sm:$0xf]
    %v1322 = vld [vmem:[%s1 + $0x40] sm:$0xf]
    %v1323 = vld [vmem:[#allocation2 + $0x10] sm:$0x1]
    %v1324 = vlaneseq
    %v1325 = vshrl.u32 %v1324, 7
    %v1326 = vsub.s32 0, %v1325
    %v1327 = vrot.slane %v1323, %v1326
    %v1329 = vrot.slane %v1318, 2
    %1330 = vrot.lane.b32.xlu0 %v1329, 32
    %v1331 = vpop.permute.xlu0 %1330
    %v1336 = vunpack.c.l.b16 %v1319
    %v1337 = vunpack.c.l.b16 %v1320
    %v1338 = vunpack.c.l.b16 %v1321
    %v1339 = vunpack.c.l.b16 %v1322
    %v1340 = vpack.c.b16 %v1337, %v1336
    %v1341 = vpack.c.b16 %v1339, %v1338
    %v1345 = vsel %vm143, %v1331, 0
    %1347 = vmatprep.subr.bf16.mxu0 0
    %1348 = vmatpush1.bf16.msra.mxu0 0
    %1349 = vmatprep.subr.bf16.mxu0 0
    %1350 = vmatpush1.bf16.msra.mxu0 0
    %1351 = vmatprep.subr.bf16.mxu0 0
    %1352 = vmatpush1.bf16.msra.mxu0 0
    %1353 = vmatprep.subr.bf16.mxu0 0
    %1354 = vmatpush1.bf16.msra.mxu0 0
    %1355 = vmatprep.subr.bf16.mxu0 0
    %1356 = vmatpush1.bf16.msra.mxu0 0
    %1357 = vmatprep.subr.bf16.mxu0 0
    %1358 = vmatpush1.bf16.msra.mxu0 0
    %1359 = vmatprep.subr.bf16.mxu0 0
    %1360 = vmatpush1.bf16.msra.mxu0 %v1341
    %1361 = vmatprep.subr.bf16.mxu0 0
    %1362 = vmatpush1.bf16.msra.mxu0 %v1340
    %1363 = vmatprep.subr.bf16.mxu0 0
    %1364 = vmatpush2.bf16.msra.mxu0 0
    %1365 = vmatprep.subr.bf16.mxu0 0
    %1366 = vmatpush2.bf16.msra.mxu0 0
    %1367 = vmatprep.subr.bf16.mxu0 0
    %1368 = vmatpush2.bf16.msra.mxu0 0
    %1369 = vmatprep.subr.bf16.mxu0 0
    %1370 = vmatpush2.bf16.msra.mxu0 0
    %1371 = vmatprep.subr.bf16.mxu0 0
    %1372 = vmatpush2.bf16.msra.mxu0 0
    %1373 = vmatprep.subr.bf16.mxu0 0
    %1374 = vmatpush2.bf16.msra.mxu0 0
    %1375 = vmatprep.subr.bf16.mxu0 0
    %1376 = vmatpush2.bf16.msra.mxu0 0
    %1377 = vmatprep.subr.bf16.mxu0 0
    %1378 = vmatpush2.bf16.msra.mxu0 0
    %1379 = vmatprep.mubr.bf16.mxu0 0
    %1380 = vmatmul.mubr.bf16.gmra.mxu0 %v1345
    %v1381 = vpop.f32.mrf.mxu0
    %v1382 = vadd.f32 %v1327, %v1381
    %v1383 = vpop.f32.mrf.mxu0
    %v1384 = vpop.f32.mrf.mxu0
    %v1385 = vpop.f32.mrf.mxu0
    %1386 = vdwg.mxu0
    %v1387 = vtanh.pop %v1382
    %v1389 = vrot.slane %v1387, 2
    %v1391 = vsub.f32 %v1387, %v1389
    %v1392 = vand.u32 2147483647, %v1391
    %v1393 = vmul.f32 %v1387, %v1389
    %1395 = vrot.lane.b32.xlu0 %v1393, 16
    %v1396 = vpop.permute.xlu0 %1395
    %vm1398 = vcmask 130048
    %v1399 = vsel %vm1398, %v1392, %v1396
    %v1400 = vpack.c.bf16 %v1399, %v1399
    %v1401 = vld [vmem:[%s1 + $0x44] sm:$0xf]
    %v1402 = vld [vmem:[%s1 + $0x48] sm:$0xf]
    %v1403 = vld [vmem:[%s1 + $0x4c] sm:$0xf]
    %v1404 = vld [vmem:[%s1 + $0x50] sm:$0xf]
    %v1405 = vld [vmem:[#allocation2 + $0x18] sm:$0x1]
    %v1406 = vlaneseq
    %v1407 = vshrl.u32 %v1406, 7
    %v1408 = vsub.s32 0, %v1407
    %v1409 = vrot.slane %v1405, %v1408
    %v1414 = vunpack.c.l.b16 %v1401
    %v1415 = vunpack.c.l.b16 %v1402
    %v1416 = vunpack.c.l.b16 %v1403
    %v1417 = vunpack.c.l.b16 %v1404
    %v1418 = vpack.c.b16 %v1415, %v1414
    %v1419 = vpack.c.b16 %v1417, %v1416
    %v1423 = vsel %vm143, %v1400, 0
    %1425 = vmatprep.subr.bf16.mxu0 0
    %1426 = vmatpush1.bf16.msra.mxu0 0
    %1427 = vmatprep.subr.bf16.mxu0 0
    %1428 = vmatpush1.bf16.msra.mxu0 0
    %1429 = vmatprep.subr.bf16.mxu0 0
    %1430 = vmatpush1.bf16.msra.mxu0 0
    %1431 = vmatprep.subr.bf16.mxu0 0
    %1432 = vmatpush1.bf16.msra.mxu0 0
    %1433 = vmatprep.subr.bf16.mxu0 0
    %1434 = vmatpush1.bf16.msra.mxu0 0
    %1435 = vmatprep.subr.bf16.mxu0 0
    %1436 = vmatpush1.bf16.msra.mxu0 0
    %1437 = vmatprep.subr.bf16.mxu0 0
    %1438 = vmatpush1.bf16.msra.mxu0 %v1419
    %1439 = vmatprep.subr.bf16.mxu0 0
    %1440 = vmatpush1.bf16.msra.mxu0 %v1418
    %1441 = vmatprep.subr.bf16.mxu0 0
    %1442 = vmatpush2.bf16.msra.mxu0 0
    %1443 = vmatprep.subr.bf16.mxu0 0
    %1444 = vmatpush2.bf16.msra.mxu0 0
    %1445 = vmatprep.subr.bf16.mxu0 0
    %1446 = vmatpush2.bf16.msra.mxu0 0
    %1447 = vmatprep.subr.bf16.mxu0 0
    %1448 = vmatpush2.bf16.msra.mxu0 0
    %1449 = vmatprep.subr.bf16.mxu0 0
    %1450 = vmatpush2.bf16.msra.mxu0 0
    %1451 = vmatprep.subr.bf16.mxu0 0
    %1452 = vmatpush2.bf16.msra.mxu0 0
    %1453 = vmatprep.subr.bf16.mxu0 0
    %1454 = vmatpush2.bf16.msra.mxu0 0
    %1455 = vmatprep.subr.bf16.mxu0 0
    %1456 = vmatpush2.bf16.msra.mxu0 0
    %1457 = vmatprep.mubr.bf16.mxu0 0
    %1458 = vmatmul.mubr.bf16.gmra.mxu0 %v1423
    %v1459 = vpop.f32.mrf.mxu0
    %v1460 = vadd.f32 %v1409, %v1459
    %v1461 = vpop.f32.mrf.mxu0
    %v1462 = vpop.f32.mrf.mxu0
    %v1463 = vpop.f32.mrf.mxu0
    %1464 = vdwg.mxu0
    %v1465 = vmax.f32 %v1460, 0.0
    %v1466 = vpack.c.bf16 %v1465, %v1465
    %v1467 = vld [vmem:[%s1 + $0x54] sm:$0xf]
    %v1468 = vld [vmem:[%s1 + $0x58] sm:$0xf]
    %v1469 = vld [vmem:[%s1 + $0x5c] sm:$0xf]
    %v1470 = vld [vmem:[%s1 + $0x60] sm:$0xf]
    %v1471 = vld [vmem:[#allocation2 + $0x20] sm:$0x1]
    %v1472 = vlaneseq
    %v1473 = vshrl.u32 %v1472, 7
    %v1474 = vsub.s32 0, %v1473
    %v1475 = vrot.slane %v1471, %v1474
    %v1480 = vunpack.c.l.b16 %v1467
    %v1481 = vunpack.c.l.b16 %v1468
    %v1482 = vunpack.c.l.b16 %v1469
    %v1483 = vunpack.c.l.b16 %v1470
    %v1484 = vpack.c.b16 %v1481, %v1480
    %v1485 = vpack.c.b16 %v1483, %v1482
    %v1489 = vsel %vm143, %v1466, 0
    %1491 = vmatprep.subr.bf16.mxu0 0
    %1492 = vmatpush1.bf16.msra.mxu0 0
    %1493 = vmatprep.subr.bf16.mxu0 0
    %1494 = vmatpush1.bf16.msra.mxu0 0
    %1495 = vmatprep.subr.bf16.mxu0 0
    %1496 = vmatpush1.bf16.msra.mxu0 0
    %1497 = vmatprep.subr.bf16.mxu0 0
    %1498 = vmatpush1.bf16.msra.mxu0 0
    %1499 = vmatprep.subr.bf16.mxu0 0
    %1500 = vmatpush1.bf16.msra.mxu0 0
    %1501 = vmatprep.subr.bf16.mxu0 0
    %1502 = vmatpush1.bf16.msra.mxu0 0
    %1503 = vmatprep.subr.bf16.mxu0 0
    %1504 = vmatpush1.bf16.msra.mxu0 %v1485
    %1505 = vmatprep.subr.bf16.mxu0 0
    %1506 = vmatpush1.bf16.msra.mxu0 %v1484
    %1507 = vmatprep.subr.bf16.mxu0 0
    %1508 = vmatpush2.bf16.msra.mxu0 0
    %1509 = vmatprep.subr.bf16.mxu0 0
    %1510 = vmatpush2.bf16.msra.mxu0 0
    %1511 = vmatprep.subr.bf16.mxu0 0
    %1512 = vmatpush2.bf16.msra.mxu0 0
    %1513 = vmatprep.subr.bf16.mxu0 0
    %1514 = vmatpush2.bf16.msra.mxu0 0
    %1515 = vmatprep.subr.bf16.mxu0 0
    %1516 = vmatpush2.bf16.msra.mxu0 0
    %1517 = vmatprep.subr.bf16.mxu0 0
    %1518 = vmatpush2.bf16.msra.mxu0 0
    %1519 = vmatprep.subr.bf16.mxu0 0
    %1520 = vmatpush2.bf16.msra.mxu0 0
    %1521 = vmatprep.subr.bf16.mxu0 0
    %1522 = vmatpush2.bf16.msra.mxu0 0
    %1523 = vmatprep.mubr.bf16.mxu0 0
    %1524 = vmatmul.mubr.bf16.gmra.mxu0 %v1489
    %v1525 = vpop.f32.mrf.mxu0
    %v1526 = vadd.f32 %v1475, %v1525
    %v1527 = vpop.f32.mrf.mxu0
    %v1528 = vpop.f32.mrf.mxu0
    %v1529 = vpop.f32.mrf.mxu0
    %1530 = vdwg.mxu0
    %v1531 = vmax.f32 %v1526, 0.0
    %v1532 = vpack.c.bf16 %v1531, %v1531
    %v1533 = vld [vmem:[%s1 + $0x64] sm:$0xf]
    %v1534 = vld [vmem:[%s1 + $0x68] sm:$0xf]
    %v1535 = vld [vmem:[%s1 + $0x6c] sm:$0xf]
    %v1536 = vld [vmem:[%s1 + $0x70] sm:$0xf]
    %v1537 = vld [vmem:[#allocation2 + $0x28] sm:$0x1]
    %v1538 = vlaneseq
    %v1539 = vshrl.u32 %v1538, 7
    %v1540 = vsub.s32 0, %v1539
    %v1541 = vrot.slane %v1537, %v1540
    %v1546 = vunpack.c.l.b16 %v1533
    %v1547 = vunpack.c.l.b16 %v1534
    %v1548 = vunpack.c.l.b16 %v1535
    %v1549 = vunpack.c.l.b16 %v1536
    %v1550 = vpack.c.b16 %v1547, %v1546
    %v1551 = vpack.c.b16 %v1549, %v1548
    %v1555 = vsel %vm143, %v1532, 0
    %1557 = vmatprep.subr.bf16.mxu0 0
    %1558 = vmatpush1.bf16.msra.mxu0 0
    %1559 = vmatprep.subr.bf16.mxu0 0
    %1560 = vmatpush1.bf16.msra.mxu0 0
    %1561 = vmatprep.subr.bf16.mxu0 0
    %1562 = vmatpush1.bf16.msra.mxu0 0
    %1563 = vmatprep.subr.bf16.mxu0 0
    %1564 = vmatpush1.bf16.msra.mxu0 0
    %1565 = vmatprep.subr.bf16.mxu0 0
    %1566 = vmatpush1.bf16.msra.mxu0 0
    %1567 = vmatprep.subr.bf16.mxu0 0
    %1568 = vmatpush1.bf16.msra.mxu0 0
    %1569 = vmatprep.subr.bf16.mxu0 0
    %1570 = vmatpush1.bf16.msra.mxu0 %v1551
    %1571 = vmatprep.subr.bf16.mxu0 0
    %1572 = vmatpush1.bf16.msra.mxu0 %v1550
    %1573 = vmatprep.subr.bf16.mxu0 0
    %1574 = vmatpush2.bf16.msra.mxu0 0
    %1575 = vmatprep.subr.bf16.mxu0 0
    %1576 = vmatpush2.bf16.msra.mxu0 0
    %1577 = vmatprep.subr.bf16.mxu0 0
    %1578 = vmatpush2.bf16.msra.mxu0 0
    %1579 = vmatprep.subr.bf16.mxu0 0
    %1580 = vmatpush2.bf16.msra.mxu0 0
    %1581 = vmatprep.subr.bf16.mxu0 0
    %1582 = vmatpush2.bf16.msra.mxu0 0
    %1583 = vmatprep.subr.bf16.mxu0 0
    %1584 = vmatpush2.bf16.msra.mxu0 0
    %1585 = vmatprep.subr.bf16.mxu0 0
    %1586 = vmatpush2.bf16.msra.mxu0 0
    %1587 = vmatprep.subr.bf16.mxu0 0
    %1588 = vmatpush2.bf16.msra.mxu0 0
    %1589 = vmatprep.mubr.bf16.mxu0 0
    %1590 = vmatmul.mubr.bf16.gmra.mxu0 %v1555
    %v1591 = vpop.f32.mrf.mxu0
    %v1592 = vadd.f32 %v1541, %v1591
    %v1593 = vpop.f32.mrf.mxu0
    %v1594 = vpop.f32.mrf.mxu0
    %v1595 = vpop.f32.mrf.mxu0
    %1596 = vdwg.mxu0
    %vm1597 = vcmask 1024
    %1598 = vst.msk [vmem:[%s3] sm:$0x3] %vm1597, %v1592
    // Predicated region
    $region18: #{model_forward.1} parent=1 // pred_check
      _
    $region19: #{model_forward.1} parent=1 // pred_check_branch
      %1600 = sbr.rel (0) target = $region21
    $region20: #{model_forward.1} parent=1 // pred_region
      _
    $region21: #{model_forward.1} parent=1 // pred_fallthru
      _
    // Predicated region
    $region22: #{model_forward.1} parent=1 // pred_check
      _
    $region23: #{model_forward.1} parent=1 // pred_check_branch
      %1602 = sbr.rel (0) target = $region25
    $region24: #{model_forward.1} parent=1 // pred_region
      _
    $region25: #{model_forward.1} parent=1 // pred_fallthru
      _
    %1603 = vsyncpa [#allocation3], 1

</llo_original>
